<compile_context>
chip_gen: v5e
topology: v5e:2x2
jax: 0.10.0
libtpu: 0.0.40
codegen_flags: <defaults>
</compile_context>

<pallas_src>
import math

import jax
import jax.numpy as jnp
import numpy as np
from jax.experimental import pallas as pl
from jax.experimental.pallas import tpu as pltpu

OUT_SIZE = 224
MEAN = (0.485, 0.456, 0.406)
STD = (0.229, 0.224, 0.225)
ALPHA = 0.4


def _bilinear_matrix(out_size, in_size):
    """Bilinear interpolation matrix W s.t. resized = W @ x (half-pixel centers,
    align_corners=False; equivalent to torchvision Resize for upsampling)."""
    o = np.arange(out_size, dtype=np.float64)
    src = (o + 0.5) * in_size / out_size - 0.5
    i0 = np.floor(src).astype(np.int64)
    frac = src - i0
    i1 = i0 + 1
    i0c = np.clip(i0, 0, in_size - 1)
    i1c = np.clip(i1, 0, in_size - 1)
    W = np.zeros((out_size, in_size), dtype=np.float64)
    np.add.at(W, (np.arange(out_size), i0c), 1.0 - frac)
    np.add.at(W, (np.arange(out_size), i1c), frac)
    return W.astype(np.float32)


def _build_constants(Hin, Win, bbox, mean, std):
    """Host-side precompute of all constant operands.

    Returns:
      mean_flat : (C*Hin, Win)        per-channel mean broadcast over the input tile
      whb       : (C*224, C*Hin)      block-diag Wh, scaled by 1/std[c] per block
      whbm      : (C*224, C*Hin)      same, with rows outside [bbx1,bbx2) zeroed
      wwt       : (Win, 224)          Ww^T
      wwt_m     : (Win, 224)          Ww^T with cols outside [bby1,bby2) zeroed
      wh, ww    : raw f32 interp matrices (for the reference check)
    """
    C = len(mean)
    wh = _bilinear_matrix(OUT_SIZE, Hin)          # (224, Hin)
    ww = _bilinear_matrix(OUT_SIZE, Win)          # (224, Win)
    bbx1, bby1, bbx2, bby2 = bbox

    idx = np.arange(OUT_SIZE)
    row_mask = ((idx >= bbx1) & (idx < bbx2)).astype(np.float32)   # output H (dim 2)
    col_mask = ((idx >= bby1) & (idx < bby2)).astype(np.float32)   # output W (dim 3)

    inv_std = (1.0 / np.asarray(std, np.float64)).astype(np.float32)

    wh_m = wh * row_mask[:, None]
    whb = np.zeros((C * OUT_SIZE, C * Hin), np.float32)
    whbm = np.zeros_like(whb)
    for c in range(C):
        whb[c * OUT_SIZE:(c + 1) * OUT_SIZE, c * Hin:(c + 1) * Hin] = wh * inv_std[c]
        whbm[c * OUT_SIZE:(c + 1) * OUT_SIZE, c * Hin:(c + 1) * Hin] = wh_m * inv_std[c]

    wwt = np.ascontiguousarray(ww.T)              # (Win, 224)
    wwt_m = wwt * col_mask[None, :]

    mean_flat = (np.repeat(np.asarray(mean, np.float32), Hin)[:, None]
                 * np.ones((1, Win), np.float32))  # (C*Hin, Win)

    return (jnp.asarray(mean_flat), jnp.asarray(whb), jnp.asarray(whbm),
            jnp.asarray(wwt), jnp.asarray(wwt_m), wh, ww)


def cutmix_kernel(rand_idx_ref,          # SMEM scalar prefetch: (B,) int32 (used in index_map)
                  mean_ref,              # VMEM (C*Hin, Win) f32
                  whb_ref, whbm_ref,     # VMEM (C*224, C*Hin) f32
                  wwt_ref, wwtm_ref,     # VMEM (Win, 224) f32
                  x_ref, xp_ref,         # VMEM (C*Hin, Win) own / permuted image
                  o_ref):                # VMEM out: (C*224, 224) f32
    del rand_idx_ref  # only consumed by the index_map of xp_ref
    # Input-space normalization (mean only; 1/std is folded into whb/whbm).
    xn = x_ref[...] - mean_ref[...]          # (C*Hin, Win)
    dn = xp_ref[...] - x_ref[...]            # CutMix delta (mean cancels)

    # Stage 1: W-side resize, stacked over channels (single small-K matmul each).
    y = jnp.dot(xn, wwt_ref[...], preferred_element_type=jnp.float32)    # (C*Hin, 224)
    dy = jnp.dot(dn, wwtm_ref[...], preferred_element_type=jnp.float32)  # (C*Hin, 224)

    # Stage 2: block-diagonal H-side resize (+ 1/std) for all channels at once;
    # the masked term adds the permuted-image delta only inside the bbox.
    o_ref[...] = (jnp.dot(whb_ref[...], y, preferred_element_type=jnp.float32)
                  + jnp.dot(whbm_ref[...], dy, preferred_element_type=jnp.float32))


def cutmix_forward(augment_images, rand_index, mean_flat, whb, whbm, wwt, wwt_m):
    """augment_images: (B, C, Hin, Win) f32 -> (B, C, 224, 224) f32."""
    B, C, Hin, Win = augment_images.shape
    # Flatten (C, Hin) into one sublane axis so each grid step handles all
    # channels with stacked matmuls (no in-kernel reshapes needed).
    x_flat = augment_images.reshape(B, C * Hin, Win)

    out_flat = pl.pallas_call(
        cutmix_kernel,
        out_shape=jax.ShapeDtypeStruct((B, C * OUT_SIZE, OUT_SIZE), jnp.float32),
        grid_spec=pltpu.PrefetchScalarGridSpec(
            num_scalar_prefetch=1,
            grid=(B,),
            in_specs=[
                pl.BlockSpec((C * Hin, Win), lambda b, ridx: (0, 0)),            # mean
                pl.BlockSpec((C * OUT_SIZE, C * Hin), lambda b, ridx: (0, 0)),   # whb
                pl.BlockSpec((C * OUT_SIZE, C * Hin), lambda b, ridx: (0, 0)),   # whbm
                pl.BlockSpec((Win, OUT_SIZE), lambda b, ridx: (0, 0)),           # wwt
                pl.BlockSpec((Win, OUT_SIZE), lambda b, ridx: (0, 0)),           # wwt_m
                # own image (all channels)
                pl.BlockSpec((None, C * Hin, Win), lambda b, ridx: (b, 0, 0)),
                # permuted-batch image, gathered via scalar prefetch
                pl.BlockSpec((None, C * Hin, Win), lambda b, ridx: (ridx[b], 0, 0)),
            ],
            out_specs=pl.BlockSpec((None, C * OUT_SIZE, OUT_SIZE),
                                   lambda b, ridx: (b, 0, 0)),
        ),
        compiler_params=pltpu.CompilerParams(
            dimension_semantics=("parallel",)),
    )(rand_index, mean_flat, whb, whbm, wwt, wwt_m, x_flat, x_flat)

    return out_flat.reshape(B, C, OUT_SIZE, OUT_SIZE)


if __name__ == "__main__":
    key = jax.random.PRNGKey(0)
    k_img, k_lam, k_perm, k_cx, k_cy = jax.random.split(key, 5)

    B, C, H, W = 2, 3, 16, 16
    augment_images = jax.random.uniform(k_img, (B, C, H, W), dtype=jnp.float32)

    # lam ~ Beta(alpha, alpha); if lam < 0.5 -> 1 - lam  (same as the module).
    lam = float(jax.random.beta(k_lam, ALPHA, ALPHA))
    if lam < 0.5:
        lam = 1.0 - lam

    # randperm over batch.
    rand_index = jax.random.permutation(k_perm, B).astype(jnp.int32)

    # rand_bbox on the resized (224, 224) image, matching the PyTorch arithmetic.
    Wsz, Hsz = OUT_SIZE, OUT_SIZE
    cut_rat = math.sqrt(1.0 - lam)
    cut_w = int(Wsz * cut_rat)
    cut_h = int(Hsz * cut_rat)
    cx = int(jax.random.randint(k_cx, (), 0, Wsz))
    cy = int(jax.random.randint(k_cy, (), 0, Hsz))
    bbx1 = int(np.clip(cx - cut_w // 2, 0, Wsz))
    bby1 = int(np.clip(cy - cut_h // 2, 0, Hsz))
    bbx2 = int(np.clip(cx + cut_w // 2, 0, Wsz))
    bby2 = int(np.clip(cy + cut_h // 2, 0, Hsz))

    mean_flat, whb, whbm, wwt, wwt_m, wh_np, ww_np = _build_constants(
        H, W, (bbx1, bby1, bbx2, bby2), MEAN, STD)

    out = cutmix_forward(augment_images, rand_index, mean_flat, whb, whbm, wwt, wwt_m)
    out = jax.block_until_ready(out)
    assert out.shape == (B, C, OUT_SIZE, OUT_SIZE) and out.dtype == jnp.float32

    # Numerical sanity check against a float64 numpy reference
    # (resize -> normalize -> CutMix paste, i.e. the original formulation).
    x_np = np.asarray(augment_images, dtype=np.float64)
    wh64 = wh_np.astype(np.float64)
    ww64 = ww_np.astype(np.float64)
    resized = np.einsum('oh,bchw,vw->bcov', wh64, x_np, ww64)
    normed = (resized - np.asarray(MEAN)[None, :, None, None]) \
        / np.asarray(STD)[None, :, None, None]
    ridx = np.asarray(rand_index)
    ref = normed.copy()
    ref[:, :, bbx1:bbx2, bby1:bby2] = normed[ridx][:, :, bbx1:bbx2, bby1:bby2]
    err = float(np.max(np.abs(np.asarray(out, dtype=np.float64) - ref)))
    assert err < 1e-3, f"max abs error vs reference: {err}"

    # TODO(synk): torchvision antialiased downsampling path not reproduced
    # (irrelevant here: 16 -> 224 is pure upsampling, where antialias is a no-op).
    print("KERNEL_OK")
</pallas_src>

<mosaic_0001>
module attributes {stable_mosaic.version = 11 : i64} {
  func.func @cutmix_kernel(%arg0: i32, %arg1: memref<2xi32, #tpu.memory_space<smem>>, %arg2: memref<48x16xf32, #tpu.memory_space<vmem>>, %arg3: memref<672x48xf32, #tpu.memory_space<vmem>>, %arg4: memref<672x48xf32, #tpu.memory_space<vmem>>, %arg5: memref<16x224xf32, #tpu.memory_space<vmem>>, %arg6: memref<16x224xf32, #tpu.memory_space<vmem>>, %arg7: memref<1x48x16xf32, #tpu.memory_space<vmem>>, %arg8: memref<1x48x16xf32, #tpu.memory_space<vmem>>, %arg9: memref<1x672x224xf32, #tpu.memory_space<vmem>>) attributes {dimension_semantics = [#tpu.dimension_semantics<parallel>], iteration_bounds = array<i64: 2>, scalar_prefetch = 1 : i64, scratch_operands = 0 : i64, tpu.core_type = #tpu.core_type<tc>, window_params = [{pipeline_mode = #tpu.pipeline_mode<synchronous>, transform_indices = @transform_0, window_bounds = array<i64: 48, 16>}, {pipeline_mode = #tpu.pipeline_mode<synchronous>, transform_indices = @transform_1, window_bounds = array<i64: 672, 48>}, {pipeline_mode = #tpu.pipeline_mode<synchronous>, transform_indices = @transform_2, window_bounds = array<i64: 672, 48>}, {pipeline_mode = #tpu.pipeline_mode<synchronous>, transform_indices = @transform_3, window_bounds = array<i64: 16, 224>}, {pipeline_mode = #tpu.pipeline_mode<synchronous>, transform_indices = @transform_4, window_bounds = array<i64: 16, 224>}, {transform_indices = @transform_5, window_bounds = array<i64: 1, 48, 16>}, {transform_indices = @transform_6, window_bounds = array<i64: 1, 48, 16>}, {transform_indices = @transform_7, window_bounds = array<i64: 1, 672, 224>}]} {
    %c0 = arith.constant 0 : index
    %c0_0 = arith.constant 0 : index
    %c0_1 = arith.constant 0 : index
    %0 = vector.load %arg7[%c0, %c0_0, %c0_1] : memref<1x48x16xf32, #tpu.memory_space<vmem>>, vector<1x48x16xf32>
    %1 = vector.shape_cast %0 : vector<1x48x16xf32> to vector<48x16xf32>
    %c0_2 = arith.constant 0 : index
    %c0_3 = arith.constant 0 : index
    %2 = vector.load %arg2[%c0_2, %c0_3] : memref<48x16xf32, #tpu.memory_space<vmem>>, vector<48x16xf32>
    %3 = arith.subf %1, %2 : vector<48x16xf32>
    %c0_4 = arith.constant 0 : index
    %c0_5 = arith.constant 0 : index
    %c0_6 = arith.constant 0 : index
    %4 = vector.load %arg8[%c0_4, %c0_5, %c0_6] : memref<1x48x16xf32, #tpu.memory_space<vmem>>, vector<1x48x16xf32>
    %5 = vector.shape_cast %4 : vector<1x48x16xf32> to vector<48x16xf32>
    %c0_7 = arith.constant 0 : index
    %c0_8 = arith.constant 0 : index
    %c0_9 = arith.constant 0 : index
    %6 = vector.load %arg7[%c0_7, %c0_8, %c0_9] : memref<1x48x16xf32, #tpu.memory_space<vmem>>, vector<1x48x16xf32>
    %7 = vector.shape_cast %6 : vector<1x48x16xf32> to vector<48x16xf32>
    %8 = arith.subf %5, %7 : vector<48x16xf32>
    %c0_10 = arith.constant 0 : index
    %c0_11 = arith.constant 0 : index
    %9 = vector.load %arg5[%c0_10, %c0_11] : memref<16x224xf32, #tpu.memory_space<vmem>>, vector<16x224xf32>
    %cst = arith.constant dense<0.000000e+00> : vector<48x224xf32>
    %10 = tpu.matmul %3, %9, %cst {dimension_numbers = #tpu.dot_dimension_numbers<[1], [0], [0], [1], [0, 0, 1, 1], [], []>} : vector<48x16xf32>, vector<16x224xf32>, vector<48x224xf32> -> vector<48x224xf32>
    %c0_12 = arith.constant 0 : index
    %c0_13 = arith.constant 0 : index
    %11 = vector.load %arg6[%c0_12, %c0_13] : memref<16x224xf32, #tpu.memory_space<vmem>>, vector<16x224xf32>
    %cst_14 = arith.constant dense<0.000000e+00> : vector<48x224xf32>
    %12 = tpu.matmul %8, %11, %cst_14 {dimension_numbers = #tpu.dot_dimension_numbers<[1], [0], [0], [1], [0, 0, 1, 1], [], []>} : vector<48x16xf32>, vector<16x224xf32>, vector<48x224xf32> -> vector<48x224xf32>
    %c0_15 = arith.constant 0 : index
    %c0_16 = arith.constant 0 : index
    %13 = vector.load %arg3[%c0_15, %c0_16] : memref<672x48xf32, #tpu.memory_space<vmem>>, vector<672x48xf32>
    %cst_17 = arith.constant dense<0.000000e+00> : vector<672x224xf32>
    %14 = tpu.matmul %13, %10, %cst_17 {dimension_numbers = #tpu.dot_dimension_numbers<[1], [0], [0], [1], [0, 0, 1, 1], [], []>} : vector<672x48xf32>, vector<48x224xf32>, vector<672x224xf32> -> vector<672x224xf32>
    %c0_18 = arith.constant 0 : index
    %c0_19 = arith.constant 0 : index
    %15 = vector.load %arg4[%c0_18, %c0_19] : memref<672x48xf32, #tpu.memory_space<vmem>>, vector<672x48xf32>
    %cst_20 = arith.constant dense<0.000000e+00> : vector<672x224xf32>
    %16 = tpu.matmul %15, %12, %cst_20 {dimension_numbers = #tpu.dot_dimension_numbers<[1], [0], [0], [1], [0, 0, 1, 1], [], []>} : vector<672x48xf32>, vector<48x224xf32>, vector<672x224xf32> -> vector<672x224xf32>
    %17 = arith.addf %14, %16 : vector<672x224xf32>
    %c0_21 = arith.constant 0 : index
    %c0_22 = arith.constant 0 : index
    %c0_23 = arith.constant 0 : index
    %18 = vector.load %arg9[%c0_21, %c0_22, %c0_23] : memref<1x672x224xf32, #tpu.memory_space<vmem>>, vector<1x672x224xf32>
    %19 = vector.shape_cast %18 : vector<1x672x224xf32> to vector<672x224xf32>
    %20 = vector.shape_cast %17 : vector<672x224xf32> to vector<1x672x224xf32>
    tpu.vector_store %arg9[%c0_21, %c0_22, %c0_23], %20 {strides = array<i32>} : memref<1x672x224xf32, #tpu.memory_space<vmem>>, vector<1x672x224xf32>,
    return
  }
  func.func @transform_0(%arg0: i32, %arg1: memref<2xi32, #tpu.memory_space<smem>>) -> (i32, i32) {
    %c0_i32 = arith.constant 0 : i32
    %c0_i32_0 = arith.constant 0 : i32
    %c0_i32_1 = arith.constant 0 : i32
    return %c0_i32, %c0_i32_0 : i32, i32
  }
  func.func @transform_1(%arg0: i32, %arg1: memref<2xi32, #tpu.memory_space<smem>>) -> (i32, i32) {
    %c0_i32 = arith.constant 0 : i32
    %c0_i32_0 = arith.constant 0 : i32
    %c0_i32_1 = arith.constant 0 : i32
    return %c0_i32, %c0_i32_0 : i32, i32
  }
  func.func @transform_2(%arg0: i32, %arg1: memref<2xi32, #tpu.memory_space<smem>>) -> (i32, i32) {
    %c0_i32 = arith.constant 0 : i32
    %c0_i32_0 = arith.constant 0 : i32
    %c0_i32_1 = arith.constant 0 : i32
    return %c0_i32, %c0_i32_0 : i32, i32
  }
  func.func @transform_3(%arg0: i32, %arg1: memref<2xi32, #tpu.memory_space<smem>>) -> (i32, i32) {
    %c0_i32 = arith.constant 0 : i32
    %c0_i32_0 = arith.constant 0 : i32
    %c0_i32_1 = arith.constant 0 : i32
    return %c0_i32, %c0_i32_0 : i32, i32
  }
  func.func @transform_4(%arg0: i32, %arg1: memref<2xi32, #tpu.memory_space<smem>>) -> (i32, i32) {
    %c0_i32 = arith.constant 0 : i32
    %c0_i32_0 = arith.constant 0 : i32
    %c0_i32_1 = arith.constant 0 : i32
    return %c0_i32, %c0_i32_0 : i32, i32
  }
  func.func @transform_5(%arg0: i32, %arg1: memref<2xi32, #tpu.memory_space<smem>>) -> (i32, i32, i32) {
    %c0_i32 = arith.constant 0 : i32
    %c0_i32_0 = arith.constant 0 : i32
    %c0_i32_1 = arith.constant 0 : i32
    return %arg0, %c0_i32, %c0_i32_0 : i32, i32, i32
  }
  func.func @transform_6(%arg0: i32, %arg1: memref<2xi32, #tpu.memory_space<smem>>) -> (i32, i32, i32) {
    %0 = arith.index_cast %arg0 : i32 to index
    %1 = memref.load %arg1[%0] : memref<2xi32, #tpu.memory_space<smem>>
    %c0_i32 = arith.constant 0 : i32
    %c0_i32_0 = arith.constant 0 : i32
    %c0_i32_1 = arith.constant 0 : i32
    return %1, %c0_i32, %c0_i32_0 : i32, i32, i32
  }
  func.func @transform_7(%arg0: i32, %arg1: memref<2xi32, #tpu.memory_space<smem>>) -> (i32, i32, i32) {
    %c0_i32 = arith.constant 0 : i32
    %c0_i32_0 = arith.constant 0 : i32
    %c0_i32_1 = arith.constant 0 : i32
    return %arg0, %c0_i32, %c0_i32_0 : i32, i32, i32
  }
}

</mosaic_0001>

<llo_original>
// kernel: tpu_custom_call.1
$region0: #{tpu_custom_call.1}
  #allocation0 [shape = 'u32[]', space=smem, size = 0x4, offset = 0x4, fixed_abs, tag = 'smem constant byte address 0x4 - core index']
  #allocation1 [shape = 'u32[72,128]{1,0:T(1,128)}', space=vmem, size = 0x9000, scoped, tag = 'internal scratch']
  #allocation2 [shape = 's32[1]{0}', space=sflag, size = 0x4, scoped, tag = 'scoped memory for tpu_custom_call.1']
  #allocation3 [shape = 'u8[512]{0}', space=smem, size = 0x200, scoped, tag = 'prefetched SMEM operand 0']
  %s0 = inlined_call_operand.hbm [shape: s32[2], index: 0, kind: input, shape index: {}]
  %s1 = inlined_call_operand.vmem [shape: f32[48,16], index: 1, kind: input, shape index: {}]
  %s2 = inlined_call_operand.vmem [shape: f32[672,48], index: 2, kind: input, shape index: {}]
  %s3 = inlined_call_operand.vmem [shape: f32[672,48], index: 3, kind: input, shape index: {}]
  %s4 = inlined_call_operand.hbm [shape: f32[16,224], index: 4, kind: input, shape index: {}]
  %s5 = inlined_call_operand.hbm [shape: f32[16,224], index: 5, kind: input, shape index: {}]
  %s6 = inlined_call_operand.vmem [shape: f32[2,48,16], index: 6, kind: input, shape index: {}]
  %s7 = inlined_call_operand.vmem [shape: f32[2,48,16], index: 7, kind: input, shape index: {}]
  %s8 = inlined_call_operand.hbm [shape: f32[2,672,224], index: 8, kind: output, shape index: {}]
  %s9 = sld [smem:[#allocation0]]
  $region69: #{tpu_custom_call.1} parent=0
    _
  %s11 = ssub.s32 1, %s9
  %s12 = scalar_select 0, %s11, %s9
  %s14 = sshll.u32 %s0, 4
  %s15 = int_to_ptr.hbm [resolvable:$true] %s14
  %17 = dma.hbm_to_smem %s15, 16, [#allocation3], [#allocation2]
  %19 = dma.done [#allocation2], 16
  %20 = sfence
  $region1: #{tpu_custom_call.1} parent=0
    #allocation4 [shape = 'u8[16384]{0}', space=vmem, size = 0x4000, scoped, tag = 'input window, operand 4, single buffered']
    #allocation5 [shape = 's32[2]{0}', space=sflag, size = 0x8, scoped, tag = 'scoped memory for tpu_custom_call.1']
    #allocation6 [shape = 's32[2]{0}', space=sflag, size = 0x8, scoped, tag = 'scoped memory for tpu_custom_call.1']
    #allocation7 [shape = 'u8[16384]{0}', space=vmem, size = 0x4000, scoped, tag = 'input window, operand 5, single buffered']
    #allocation8 [shape = 's32[1]{0}', space=sflag, size = 0x4, scoped, tag = 'scoped memory for tpu_custom_call.1']
    #allocation9 [shape = 'u8[1376256]{0}', space=vmem, size = 0x150000, scoped, tag = 'output window, operand 0']
    %21 = vsyncpa [#allocation5], 0
    %22 = vsyncpa [#allocation8], 0
    %23 = vsyncpa [#allocation6], 0
    %s24 = scalar_lea.sflag [#allocation6], 1
    %25 = vsyncpa %s24, 0
    loop: start=0, step=1, limit=4
    $region2: #{tpu_custom_call.1} parent=1 // loop_pre_header
      _
    $region3: #{tpu_custom_call.1} parent=1 // loop_header
      %s27 = sphi 0, %s31
      %p28 = scmp.ge.s32.totalorder %s27, 4
      %s35 = sphi 0, %s35
      %s37 = sphi 0, %s35
      %s38 = sphi 0, %s37
      %s52 = sphi 0, %s38
      %s56 = sphi 0, %s56
      %s58 = sphi 0, %s56
      %s59 = sphi 0, %s58
      %s73 = sphi 0, %s59
      %s77 = sphi 0, %s77
      %s79 = sphi 0, %s77
      %s80 = sphi 0, %s79
      %s94 = sphi 0, %s80
      %s98 = sphi 0, %s98
      %s100 = sphi 0, %s98
      %s101 = sphi 0, %s100
      %s115 = sphi 0, %s101
      %s119 = sphi 0, %s119
      %s121 = sphi 0, %s119
      %s122 = sphi 0, %s121
      %s136 = sphi 0, %s122
      %s142 = sphi 0, %s144
      %s145 = sphi 0, %s142
      %s146 = sphi 0, %s145
      %s162 = sphi 0, %s146
      %s170 = sphi 0, %s172
      %s173 = sphi 0, %s170
      %s174 = sphi 0, %s173
      %s190 = sphi 0, %s174
      %s196 = sphi 0, %s198
      %s199 = sphi 0, %s196
      %s200 = sphi 0, %s199
      %s216 = sphi 0, %s200
    $region4: #{tpu_custom_call.1} parent=1 // loop_header_branch
      %30 = sbr.rel (%p28) target = $region8
    $region5: #{tpu_custom_call.1} parent=1 // loop_body
      %s32 = ssub.s32 %s27, 1
      %s33 = ssub.s32 %s27, 2
      %s34 = sadd.s32 %s27, 1
      %s36 = sadd.s32 %s35, 1
      %p39 = scmp.eq.s32.totalorder %s27, 1
      %p40 = scmp.ne.s32.totalorder %s35, %s37
      %p41 = scmp.eq.s32.totalorder %s27, 0
      %p42 = por %p40, %p41
      %p43 = scmp.ne.s32.totalorder %s35, %s37
      %p44 = scmp.eq.s32.totalorder %s32, 1
      %p45 = por %p43, %p44
      %p46 = scmp.ne.s32.totalorder %s37, %s38
      %p47 = scmp.eq.s32.totalorder %s32, 0
      %p48 = por %p46, %p47
      %p49 = scmp.ne.s32.totalorder %s37, %s38
      %p50 = scmp.eq.s32.totalorder %s33, 1
      %p51 = por %p49, %p50
      %p53 = scmp.ne.s32.totalorder %s38, %s52
      %p54 = scmp.eq.s32.totalorder %s33, 0
      %p55 = por %p53, %p54
      %s57 = sadd.s32 %s56, 1
      %p60 = scmp.eq.s32.totalorder %s27, 1
      %p61 = scmp.ne.s32.totalorder %s56, %s58
      %p62 = scmp.eq.s32.totalorder %s27, 0
      %p63 = por %p61, %p62
      %p64 = scmp.ne.s32.totalorder %s56, %s58
      %p65 = scmp.eq.s32.totalorder %s32, 1
      %p66 = por %p64, %p65
      %p67 = scmp.ne.s32.totalorder %s58, %s59
      %p68 = scmp.eq.s32.totalorder %s32, 0
      %p69 = por %p67, %p68
      %p70 = scmp.ne.s32.totalorder %s58, %s59
      %p71 = scmp.eq.s32.totalorder %s33, 1
      %p72 = por %p70, %p71
      %p74 = scmp.ne.s32.totalorder %s59, %s73
      %p75 = scmp.eq.s32.totalorder %s33, 0
      %p76 = por %p74, %p75
      %s78 = sadd.s32 %s77, 1
      %p81 = scmp.eq.s32.totalorder %s27, 1
      %p82 = scmp.ne.s32.totalorder %s77, %s79
      %p83 = scmp.eq.s32.totalorder %s27, 0
      %p84 = por %p82, %p83
      %p85 = scmp.ne.s32.totalorder %s77, %s79
      %p86 = scmp.eq.s32.totalorder %s32, 1
      %p87 = por %p85, %p86
      %p88 = scmp.ne.s32.totalorder %s79, %s80
      %p89 = scmp.eq.s32.totalorder %s32, 0
      %p90 = por %p88, %p89
      %p91 = scmp.ne.s32.totalorder %s79, %s80
      %p92 = scmp.eq.s32.totalorder %s33, 1
      %p93 = por %p91, %p92
      %p95 = scmp.ne.s32.totalorder %s80, %s94
      %p96 = scmp.eq.s32.totalorder %s33, 0
      %p97 = por %p95, %p96
      %s99 = sadd.s32 %s98, 1
      %p102 = scmp.eq.s32.totalorder %s27, 1
      %p103 = scmp.ne.s32.totalorder %s98, %s100
      %p104 = scmp.eq.s32.totalorder %s27, 0
      %p105 = por %p103, %p104
      %p106 = scmp.ne.s32.totalorder %s98, %s100
      %p107 = scmp.eq.s32.totalorder %s32, 1
      %p108 = por %p106, %p107
      %p109 = scmp.ne.s32.totalorder %s100, %s101
      %p110 = scmp.eq.s32.totalorder %s32, 0
      %p111 = por %p109, %p110
      %p112 = scmp.ne.s32.totalorder %s100, %s101
      %p113 = scmp.eq.s32.totalorder %s33, 1
      %p114 = por %p112, %p113
      %p116 = scmp.ne.s32.totalorder %s101, %s115
      %p117 = scmp.eq.s32.totalorder %s33, 0
      %p118 = por %p116, %p117
      %s120 = sadd.s32 %s119, 1
      %p123 = scmp.eq.s32.totalorder %s27, 1
      %p124 = scmp.ne.s32.totalorder %s119, %s121
      %p125 = scmp.eq.s32.totalorder %s27, 0
      %p126 = por %p124, %p125
      %p127 = scmp.ne.s32.totalorder %s119, %s121
      %p128 = scmp.eq.s32.totalorder %s32, 1
      %p129 = por %p127, %p128
      %p130 = scmp.ne.s32.totalorder %s121, %s122
      %p131 = scmp.eq.s32.totalorder %s32, 0
      %p132 = por %p130, %p131
      %p133 = scmp.ne.s32.totalorder %s121, %s122
      %p134 = scmp.eq.s32.totalorder %s33, 1
      %p135 = por %p133, %p134
      %p137 = scmp.ne.s32.totalorder %s122, %s136
      %p138 = scmp.eq.s32.totalorder %s33, 0
      %p139 = por %p137, %p138
      %s140 = ssub.s32 %s27, %s34
      %p141 = scmp.eq.s32.totalorder %s140, 0
      %s143 = sadd.s32 %s142, 1
      %s144 = scalar_select %p141, %s142, %s143
      %p147 = pneg %p141
      %p148 = scmp.eq.s32.totalorder %s27, 1
      %p149 = por %p147, %p148
      %p150 = scmp.ne.s32.totalorder %s142, %s145
      %p151 = scmp.eq.s32.totalorder %s27, 0
      %p152 = por %p150, %p151
      %p153 = scmp.ne.s32.totalorder %s142, %s145
      %p154 = scmp.eq.s32.totalorder %s32, 1
      %p155 = por %p153, %p154
      %p156 = scmp.ne.s32.totalorder %s145, %s146
      %p157 = scmp.eq.s32.totalorder %s32, 0
      %p158 = por %p156, %p157
      %p159 = scmp.ne.s32.totalorder %s145, %s146
      %p160 = scmp.eq.s32.totalorder %s33, 1
      %p161 = por %p159, %p160
      %p163 = scmp.ne.s32.totalorder %s146, %s162
      %p164 = scmp.eq.s32.totalorder %s33, 0
      %p165 = por %p163, %p164
      %s166 = sld [smem:[#allocation3 + %s27]]
      %s167 = sld [smem:[#allocation3 + %s34]]
      %s168 = ssub.s32 %s166, %s167
      %p169 = scmp.eq.s32.totalorder %s168, 0
      %s171 = sadd.s32 %s170, 1
      %s172 = scalar_select %p169, %s170, %s171
      %p175 = pneg %p169
      %p176 = scmp.eq.s32.totalorder %s27, 1
      %p177 = por %p175, %p176
      %p178 = scmp.ne.s32.totalorder %s170, %s173
      %p179 = scmp.eq.s32.totalorder %s27, 0
      %p180 = por %p178, %p179
      %p181 = scmp.ne.s32.totalorder %s170, %s173
      %p182 = scmp.eq.s32.totalorder %s32, 1
      %p183 = por %p181, %p182
      %p184 = scmp.ne.s32.totalorder %s173, %s174
      %p185 = scmp.eq.s32.totalorder %s32, 0
      %p186 = por %p184, %p185
      %p187 = scmp.ne.s32.totalorder %s173, %s174
      %p188 = scmp.eq.s32.totalorder %s33, 1
      %p189 = por %p187, %p188
      %p191 = scmp.ne.s32.totalorder %s174, %s190
      %p192 = scmp.eq.s32.totalorder %s33, 0
      %p193 = por %p191, %p192
      %s194 = ssub.s32 %s27, %s34
      %p195 = scmp.eq.s32.totalorder %s194, 0
      %s197 = sadd.s32 %s196, 1
      %s198 = scalar_select %p195, %s196, %s197
      %p201 = pneg %p195
      %p202 = scmp.eq.s32.totalorder %s27, 1
      %p203 = por %p201, %p202
      %p204 = scmp.ne.s32.totalorder %s196, %s199
      %p205 = scmp.eq.s32.totalorder %s27, 0
      %p206 = por %p204, %p205
      %p207 = scmp.ne.s32.totalorder %s196, %s199
      %p208 = scmp.eq.s32.totalorder %s32, 1
      %p209 = por %p207, %p208
      %p210 = scmp.ne.s32.totalorder %s199, %s200
      %p211 = scmp.eq.s32.totalorder %s32, 0
      %p212 = por %p210, %p211
      %p213 = scmp.ne.s32.totalorder %s199, %s200
      %p214 = scmp.eq.s32.totalorder %s33, 1
      %p215 = por %p213, %p214
      %p217 = scmp.ne.s32.totalorder %s200, %s216
      %p218 = scmp.eq.s32.totalorder %s33, 0
      %p219 = por %p217, %p218
      %p220 = scmp.le.s32.totalorder 1, %s27
      %p221 = scmp.lt.s32.totalorder %s27, 3
      %p222 = pnand %p220, %p221
      %p223 = pneg %p222
      // Predicated region
      $region9: #{tpu_custom_call.1} parent=5 // pred_check
        _
      $region10: #{tpu_custom_call.1} parent=5 // pred_check_branch
        %225 = sbr.rel (%p222) target = $region12
      $region11: #{tpu_custom_call.1} parent=5 // pred_region
        %s226 = ssub.s32 %s27, 1
        // Predicated region
        $region13: #{tpu_custom_call.1} parent=11 // pred_check
          %p227 = pneg %p48
        $region14: #{tpu_custom_call.1} parent=11 // pred_check_branch
          %229 = sbr.rel (%p227) target = $region16
        $region15: #{tpu_custom_call.1} parent=11 // pred_region
          _
        $region16: #{tpu_custom_call.1} parent=11 // pred_fallthru
          _
        // Predicated region
        $region17: #{tpu_custom_call.1} parent=11 // pred_check
          %p230 = pneg %p69
        $region18: #{tpu_custom_call.1} parent=11 // pred_check_branch
          %232 = sbr.rel (%p230) target = $region20
        $region19: #{tpu_custom_call.1} parent=11 // pred_region
          _
        $region20: #{tpu_custom_call.1} parent=11 // pred_fallthru
          _
        // Predicated region
        $region21: #{tpu_custom_call.1} parent=11 // pred_check
          %p233 = pneg %p90
        $region22: #{tpu_custom_call.1} parent=11 // pred_check_branch
          %235 = sbr.rel (%p233) target = $region24
        $region23: #{tpu_custom_call.1} parent=11 // pred_region
          _
        $region24: #{tpu_custom_call.1} parent=11 // pred_fallthru
          _
        // Predicated region
        $region25: #{tpu_custom_call.1} parent=11 // pred_check
          %p236 = pneg %p111
        $region26: #{tpu_custom_call.1} parent=11 // pred_check_branch
          %238 = sbr.rel (%p236) target = $region28
        $region27: #{tpu_custom_call.1} parent=11 // pred_region
          %240 = vsyncadd [#allocation5], 0
          %s241 = sshll.u32 %s4, 4
          %s242 = int_to_ptr.hbm [resolvable:$true] %s241
          %s243 = sshll.u32 [#allocation4], 4
          %s244 = int_to_ptr.vmem [resolvable:$true] %s243
          %249 = dma.hbm_to_vmem [thread:$0]  %s242, 512, %s244, [#allocation5], 256, 256, 16
        $region28: #{tpu_custom_call.1} parent=11 // pred_fallthru
          _
        // Predicated region
        $region29: #{tpu_custom_call.1} parent=11 // pred_check
          %p250 = pneg %p132
        $region30: #{tpu_custom_call.1} parent=11 // pred_check_branch
          %252 = sbr.rel (%p250) target = $region32
        $region31: #{tpu_custom_call.1} parent=11 // pred_region
          %254 = vsyncadd [#allocation8], 0
          %s255 = sshll.u32 %s5, 4
          %s256 = int_to_ptr.hbm [resolvable:$true] %s255
          %s257 = sshll.u32 [#allocation7], 4
          %s258 = int_to_ptr.vmem [resolvable:$true] %s257
          %263 = dma.hbm_to_vmem [thread:$0]  %s256, 512, %s258, [#allocation8], 256, 256, 16
        $region32: #{tpu_custom_call.1} parent=11 // pred_fallthru
          _
      $region12: #{tpu_custom_call.1} parent=5 // pred_fallthru
        _
      %p264 = scmp.lt.s32.totalorder %s27, 2
      // Predicated region
      $region33: #{tpu_custom_call.1} parent=5 // pred_check
        %p265 = pneg %p264
      $region34: #{tpu_custom_call.1} parent=5 // pred_check_branch
        %267 = sbr.rel (%p265) target = $region36
      $region35: #{tpu_custom_call.1} parent=5 // pred_region
        // Predicated region
        $region37: #{tpu_custom_call.1} parent=35 // pred_check
          %p268 = pneg %p152
        $region38: #{tpu_custom_call.1} parent=35 // pred_check_branch
          %270 = sbr.rel (%p268) target = $region40
        $region39: #{tpu_custom_call.1} parent=35 // pred_region
          %p271 = scmp.lt.s32.totalorder %s27, 1
          %s272 = scalar_select %p271, %s27, 1
          %s273 = smul.addr %s272, 6
          %s274 = smul.addr %s273, 8
          %s275 = scalar_lea.vmem %s6, %s274
        $region40: #{tpu_custom_call.1} parent=35 // pred_fallthru
          _
        // Predicated region
        $region41: #{tpu_custom_call.1} parent=35 // pred_check
          %p276 = pneg %p180
        $region42: #{tpu_custom_call.1} parent=35 // pred_check_branch
          %278 = sbr.rel (%p276) target = $region44
        $region43: #{tpu_custom_call.1} parent=35 // pred_region
          %s279 = sld [smem:[#allocation3 + %s27]]
          %p280 = scmp.lt.s32.totalorder %s279, 1
          %s281 = scalar_select %p280, %s279, 1
          %s282 = smul.addr %s281, 6
          %s283 = smul.addr %s282, 8
          %s284 = scalar_lea.vmem %s7, %s283
          %s285 = sld [smem:[#allocation3 + %s27]]
        $region44: #{tpu_custom_call.1} parent=35 // pred_fallthru
          _
      $region36: #{tpu_custom_call.1} parent=5 // pred_fallthru
        _
      %p286 = scmp.le.s32.totalorder 1, %s27
      %p287 = scmp.lt.s32.totalorder %s27, 3
      %p288 = pnand %p286, %p287
      %p289 = pneg %p288
      // Predicated region
      $region45: #{tpu_custom_call.1} parent=5 // pred_check
        _
      $region46: #{tpu_custom_call.1} parent=5 // pred_check_branch
        %291 = sbr.rel (%p288) target = $region48
      $region47: #{tpu_custom_call.1} parent=5 // pred_region
        %s292 = ssub.s32 %s27, 1
        // Predicated region
        $region49: #{tpu_custom_call.1} parent=47 // pred_check
          %p293 = pneg %p111
        $region50: #{tpu_custom_call.1} parent=47 // pred_check_branch
          %295 = sbr.rel (%p293) target = $region52
        $region51: #{tpu_custom_call.1} parent=47 // pred_region
          %297 = dma.done [#allocation5], 512
        $region52: #{tpu_custom_call.1} parent=47 // pred_fallthru
          _
        // Predicated region
        $region53: #{tpu_custom_call.1} parent=47 // pred_check
          %p298 = pneg %p132
        $region54: #{tpu_custom_call.1} parent=47 // pred_check_branch
          %300 = sbr.rel (%p298) target = $region56
        $region55: #{tpu_custom_call.1} parent=47 // pred_region
          %302 = dma.done [#allocation8], 512
        $region56: #{tpu_custom_call.1} parent=47 // pred_fallthru
          _
        %p303 = pneg %p48
        %p304 = pneg %p45
        %p305 = pneg %p69
        %p306 = pneg %p66
        %p307 = pneg %p90
        %p308 = pneg %p87
        %p309 = pneg %p111
        %p310 = pneg %p108
        %p311 = pneg %p132
        %p312 = pneg %p129
        %p313 = scmp.lt.s32.totalorder %s32, 1
        %s314 = scalar_select %p313, %s32, 1
        %s315 = smul.addr %s314, 6
        %s316 = smul.addr %s315, 8
        %s317 = scalar_lea.vmem %s6, %s316
        %p318 = pneg %p158
        %p319 = pneg %p155
        %s320 = sld [smem:[#allocation3 + %s32]]
        %p321 = scmp.lt.s32.totalorder %s320, 1
        %s322 = scalar_select %p321, %s320, 1
        %s323 = smul.addr %s322, 6
        %s324 = smul.addr %s323, 8
        %s325 = scalar_lea.vmem %s7, %s324
        %p326 = pneg %p186
        %p327 = pneg %p183
        %p328 = pneg %p212
        %p329 = pneg %p209
        %s330 = sand.u32 %s199, 1
        %s331 = scalar_lea.sflag [#allocation6], %s330
        %s332 = sand.u32 %s199, 1
        %s333 = smul.addr %s332, 1344
        %s334 = scalar_lea.vmem [#allocation9], %s333
        %p335 = scmp.lt.s32.totalorder %s32, 1
        %s336 = scalar_select %p335, %s32, 1
        %s337 = smul.addr %s336, 6
        %s338 = smul.addr %s337, 8
        %s339 = scalar_lea.vmem %s6, %s338
        %s340 = sld [smem:[#allocation3 + %s32]]
        %p341 = scmp.lt.s32.totalorder %s340, 1
        %s342 = scalar_select %p341, %s340, 1
        %s343 = smul.addr %s342, 6
        %s344 = smul.addr %s343, 8
        %s345 = scalar_lea.vmem %s7, %s344
        %s346 = sld [smem:[#allocation3 + %s32]]
        %v347 = vld [vmem:[%s339] sm:$0xff]
        %v348 = vld [vmem:[%s339 + $0x8] sm:$0xff]
        %v349 = vld [vmem:[%s339 + $0x10] sm:$0xff]
        %v350 = vld [vmem:[%s339 + $0x18] sm:$0xff]
        %v351 = vld [vmem:[%s339 + $0x20] sm:$0xff]
        %v352 = vld [vmem:[%s339 + $0x28] sm:$0xff]
        %v353 = vld [vmem:[%s1] sm:$0xff]
        %v354 = vld [vmem:[%s1 + $0x8] sm:$0xff]
        %v355 = vld [vmem:[%s1 + $0x10] sm:$0xff]
        %v356 = vld [vmem:[%s1 + $0x18] sm:$0xff]
        %v357 = vld [vmem:[%s1 + $0x20] sm:$0xff]
        %v358 = vld [vmem:[%s1 + $0x28] sm:$0xff]
        %v359 = vsub.f32 %v347, %v353
        %v360 = vsub.f32 %v348, %v354
        %v361 = vsub.f32 %v349, %v355
        %v362 = vsub.f32 %v350, %v356
        %v363 = vsub.f32 %v351, %v357
        %v364 = vsub.f32 %v352, %v358
        %v365 = vld [vmem:[%s345] sm:$0xff]
        %v366 = vld [vmem:[%s345 + $0x8] sm:$0xff]
        %v367 = vld [vmem:[%s345 + $0x10] sm:$0xff]
        %v368 = vld [vmem:[%s345 + $0x18] sm:$0xff]
        %v369 = vld [vmem:[%s345 + $0x20] sm:$0xff]
        %v370 = vld [vmem:[%s345 + $0x28] sm:$0xff]
        %v371 = vsub.f32 %v365, %v347
        %v372 = vsub.f32 %v366, %v348
        %v373 = vsub.f32 %v367, %v349
        %v374 = vsub.f32 %v368, %v350
        %v375 = vsub.f32 %v369, %v351
        %v376 = vsub.f32 %v370, %v352
        %v377 = vld [vmem:[#allocation4] sm:$0xff]
        %v378 = vld [vmem:[#allocation4 + $0x8] sm:$0xff]
        %v379 = vld [vmem:[#allocation4 + $0x10] sm:$0xff]
        %v380 = vld [vmem:[#allocation4 + $0x18] sm:$0xff]
        %vm381 = vcmask 130048
        %v383 = vsel %vm381, %v359, 0
        %v386 = vsel %vm381, %v360, 0
        %v389 = vsel %vm381, %v361, 0
        %v392 = vsel %vm381, %v362, 0
        %v395 = vsel %vm381, %v363, 0
        %v398 = vsel %vm381, %v364, 0
        %400 = vmatpush.msra.mxu0 0.0
        %401 = vmatpush.msra.mxu0 0.0
        %402 = vmatpush.msra.mxu0 0.0
        %403 = vmatpush.msra.mxu0 0.0
        %404 = vmatpush.msra.mxu0 0.0
        %405 = vmatpush.msra.mxu0 0.0
        %406 = vmatpush.msra.mxu0 0.0
        %407 = vmatpush.msra.mxu0 0.0
        %408 = vmatpush.msra.mxu0 0.0
        %409 = vmatpush.msra.mxu0 0.0
        %410 = vmatpush.msra.mxu0 0.0
        %411 = vmatpush.msra.mxu0 0.0
        %412 = vmatpush.msra.mxu0 0.0
        %413 = vmatpush.msra.mxu0 0.0
        %414 = vmatpush.msra.mxu0 %v379
        %415 = vmatpush.msra.mxu0 %v377
        %416 = vmatmul.f32.gmra.mxu0 %v383
        %v417 = vpop.f32.mrf.mxu0
        %v418 = vadd.f32 0.0, %v417
        %419 = vmatmul.f32.gmra.mxu0 %v386
        %v420 = vpop.f32.mrf.mxu0
        %v421 = vadd.f32 0.0, %v420
        %422 = vmatmul.f32.gmra.mxu0 %v389
        %v423 = vpop.f32.mrf.mxu0
        %v424 = vadd.f32 0.0, %v423
        %425 = vmatmul.f32.gmra.mxu0 %v392
        %v426 = vpop.f32.mrf.mxu0
        %v427 = vadd.f32 0.0, %v426
        %428 = vmatmul.f32.gmra.mxu0 %v395
        %v429 = vpop.f32.mrf.mxu0
        %v430 = vadd.f32 0.0, %v429
        %431 = vmatmul.f32.gmra.mxu0 %v398
        %v432 = vpop.f32.mrf.mxu0
        %v433 = vadd.f32 0.0, %v432
        %434 = vdwg.mxu0
        %435 = vmatpush.msra.mxu0 0.0
        %436 = vmatpush.msra.mxu0 0.0
        %437 = vmatpush.msra.mxu0 0.0
        %438 = vmatpush.msra.mxu0 0.0
        %439 = vmatpush.msra.mxu0 0.0
        %440 = vmatpush.msra.mxu0 0.0
        %441 = vmatpush.msra.mxu0 0.0
        %442 = vmatpush.msra.mxu0 0.0
        %443 = vmatpush.msra.mxu0 0.0
        %444 = vmatpush.msra.mxu0 0.0
        %445 = vmatpush.msra.mxu0 0.0
        %446 = vmatpush.msra.mxu0 0.0
        %447 = vmatpush.msra.mxu0 0.0
        %448 = vmatpush.msra.mxu0 0.0
        %449 = vmatpush.msra.mxu0 %v380
        %450 = vmatpush.msra.mxu0 %v378
        %451 = vmatmul.f32.gmra.mxu0 %v383
        %v452 = vpop.f32.mrf.mxu0
        %v453 = vadd.f32 0.0, %v452
        %454 = vmatmul.f32.gmra.mxu0 %v386
        %v455 = vpop.f32.mrf.mxu0
        %v456 = vadd.f32 0.0, %v455
        %457 = vmatmul.f32.gmra.mxu0 %v389
        %v458 = vpop.f32.mrf.mxu0
        %v459 = vadd.f32 0.0, %v458
        %460 = vmatmul.f32.gmra.mxu0 %v392
        %v461 = vpop.f32.mrf.mxu0
        %v462 = vadd.f32 0.0, %v461
        %463 = vmatmul.f32.gmra.mxu0 %v395
        %v464 = vpop.f32.mrf.mxu0
        %v465 = vadd.f32 0.0, %v464
        %466 = vmatmul.f32.gmra.mxu0 %v398
        %v467 = vpop.f32.mrf.mxu0
        %v468 = vadd.f32 0.0, %v467
        %469 = vdwg.mxu0
        %v470 = vld [vmem:[#allocation7] sm:$0xff]
        %v471 = vld [vmem:[#allocation7 + $0x8] sm:$0xff]
        %v472 = vld [vmem:[#allocation7 + $0x10] sm:$0xff]
        %v473 = vld [vmem:[#allocation7 + $0x18] sm:$0xff]
        %v475 = vsel %vm381, %v371, 0
        %v478 = vsel %vm381, %v372, 0
        %v481 = vsel %vm381, %v373, 0
        %v484 = vsel %vm381, %v374, 0
        %v487 = vsel %vm381, %v375, 0
        %v490 = vsel %vm381, %v376, 0
        %492 = vmatpush.msra.mxu0 0.0
        %493 = vmatpush.msra.mxu0 0.0
        %494 = vmatpush.msra.mxu0 0.0
        %495 = vmatpush.msra.mxu0 0.0
        %496 = vmatpush.msra.mxu0 0.0
        %497 = vmatpush.msra.mxu0 0.0
        %498 = vmatpush.msra.mxu0 0.0
        %499 = vmatpush.msra.mxu0 0.0
        %500 = vmatpush.msra.mxu0 0.0
        %501 = vmatpush.msra.mxu0 0.0
        %502 = vmatpush.msra.mxu0 0.0
        %503 = vmatpush.msra.mxu0 0.0
        %504 = vmatpush.msra.mxu0 0.0
        %505 = vmatpush.msra.mxu0 0.0
        %506 = vmatpush.msra.mxu0 %v472
        %507 = vmatpush.msra.mxu0 %v470
        %508 = vmatmul.f32.gmra.mxu0 %v475
        %v509 = vpop.f32.mrf.mxu0
        %v510 = vadd.f32 0.0, %v509
        %511 = vmatmul.f32.gmra.mxu0 %v478
        %v512 = vpop.f32.mrf.mxu0
        %v513 = vadd.f32 0.0, %v512
        %514 = vmatmul.f32.gmra.mxu0 %v481
        %v515 = vpop.f32.mrf.mxu0
        %v516 = vadd.f32 0.0, %v515
        %517 = vmatmul.f32.gmra.mxu0 %v484
        %v518 = vpop.f32.mrf.mxu0
        %v519 = vadd.f32 0.0, %v518
        %520 = vmatmul.f32.gmra.mxu0 %v487
        %v521 = vpop.f32.mrf.mxu0
        %v522 = vadd.f32 0.0, %v521
        %523 = vmatmul.f32.gmra.mxu0 %v490
        %v524 = vpop.f32.mrf.mxu0
        %v525 = vadd.f32 0.0, %v524
        %526 = vdwg.mxu0
        %527 = vmatpush.msra.mxu0 0.0
        %528 = vmatpush.msra.mxu0 0.0
        %529 = vmatpush.msra.mxu0 0.0
        %530 = vmatpush.msra.mxu0 0.0
        %531 = vmatpush.msra.mxu0 0.0
        %532 = vmatpush.msra.mxu0 0.0
        %533 = vmatpush.msra.mxu0 0.0
        %534 = vmatpush.msra.mxu0 0.0
        %535 = vmatpush.msra.mxu0 0.0
        %536 = vmatpush.msra.mxu0 0.0
        %537 = vmatpush.msra.mxu0 0.0
        %538 = vmatpush.msra.mxu0 0.0
        %539 = vmatpush.msra.mxu0 0.0
        %540 = vmatpush.msra.mxu0 0.0
        %541 = vmatpush.msra.mxu0 %v473
        %542 = vmatpush.msra.mxu0 %v471
        %543 = vmatmul.f32.gmra.mxu0 %v475
        %v544 = vpop.f32.mrf.mxu0
        %v545 = vadd.f32 0.0, %v544
        %546 = vmatmul.f32.gmra.mxu0 %v478
        %v547 = vpop.f32.mrf.mxu0
        %v548 = vadd.f32 0.0, %v547
        %549 = vmatmul.f32.gmra.mxu0 %v481
        %v550 = vpop.f32.mrf.mxu0
        %v551 = vadd.f32 0.0, %v550
        %552 = vmatmul.f32.gmra.mxu0 %v484
        %v553 = vpop.f32.mrf.mxu0
        %v554 = vadd.f32 0.0, %v553
        %555 = vmatmul.f32.gmra.mxu0 %v487
        %v556 = vpop.f32.mrf.mxu0
        %v557 = vadd.f32 0.0, %v556
        %558 = vmatmul.f32.gmra.mxu0 %v490
        %v559 = vpop.f32.mrf.mxu0
        %v560 = vadd.f32 0.0, %v559
        %561 = vdwg.mxu0
        %v562 = vld [vmem:[%s2] sm:$0xff]
        %v563 = vld [vmem:[%s2 + $0x8] sm:$0xff]
        %v564 = vld [vmem:[%s2 + $0x10] sm:$0xff]
        %v565 = vld [vmem:[%s2 + $0x18] sm:$0xff]
        %v566 = vld [vmem:[%s2 + $0x20] sm:$0xff]
        %v567 = vld [vmem:[%s2 + $0x28] sm:$0xff]
        %v568 = vld [vmem:[%s2 + $0x30] sm:$0xff]
        %v569 = vld [vmem:[%s2 + $0x38] sm:$0xff]
        %v570 = vld [vmem:[%s2 + $0x40] sm:$0xff]
        %v571 = vld [vmem:[%s2 + $0x48] sm:$0xff]
        %v572 = vld [vmem:[%s2 + $0x50] sm:$0xff]
        %v573 = vld [vmem:[%s2 + $0x58] sm:$0xff]
        %v574 = vld [vmem:[%s2 + $0x60] sm:$0xff]
        %v575 = vld [vmem:[%s2 + $0x68] sm:$0xff]
        %v576 = vld [vmem:[%s2 + $0x70] sm:$0xff]
        %v577 = vld [vmem:[%s2 + $0x78] sm:$0xff]
        %v578 = vld [vmem:[%s2 + $0x80] sm:$0xff]
        %v579 = vld [vmem:[%s2 + $0x88] sm:$0xff]
        %v580 = vld [vmem:[%s2 + $0x90] sm:$0xff]
        %v581 = vld [vmem:[%s2 + $0x98] sm:$0xff]
        %v582 = vld [vmem:[%s2 + $0xa0] sm:$0xff]
        %v583 = vld [vmem:[%s2 + $0xa8] sm:$0xff]
        %v584 = vld [vmem:[%s2 + $0xb0] sm:$0xff]
        %v585 = vld [vmem:[%s2 + $0xb8] sm:$0xff]
        %v586 = vld [vmem:[%s2 + $0xc0] sm:$0xff]
        %v587 = vld [vmem:[%s2 + $0xc8] sm:$0xff]
        %v588 = vld [vmem:[%s2 + $0xd0] sm:$0xff]
        %v589 = vld [vmem:[%s2 + $0xd8] sm:$0xff]
        %v590 = vld [vmem:[%s2 + $0xe0] sm:$0xff]
        %v591 = vld [vmem:[%s2 + $0xe8] sm:$0xff]
        %v592 = vld [vmem:[%s2 + $0xf0] sm:$0xff]
        %v593 = vld [vmem:[%s2 + $0xf8] sm:$0xff]
        %v594 = vld [vmem:[%s2 + $0x100] sm:$0xff]
        %v595 = vld [vmem:[%s2 + $0x108] sm:$0xff]
        %v596 = vld [vmem:[%s2 + $0x110] sm:$0xff]
        %v597 = vld [vmem:[%s2 + $0x118] sm:$0xff]
        %v598 = vld [vmem:[%s2 + $0x120] sm:$0xff]
        %v599 = vld [vmem:[%s2 + $0x128] sm:$0xff]
        %v600 = vld [vmem:[%s2 + $0x130] sm:$0xff]
        %v601 = vld [vmem:[%s2 + $0x138] sm:$0xff]
        %v602 = vld [vmem:[%s2 + $0x140] sm:$0xff]
        %v603 = vld [vmem:[%s2 + $0x148] sm:$0xff]
        %v604 = vld [vmem:[%s2 + $0x150] sm:$0xff]
        %v605 = vld [vmem:[%s2 + $0x158] sm:$0xff]
        %v606 = vld [vmem:[%s2 + $0x160] sm:$0xff]
        %v607 = vld [vmem:[%s2 + $0x168] sm:$0xff]
        %v608 = vld [vmem:[%s2 + $0x170] sm:$0xff]
        %v609 = vld [vmem:[%s2 + $0x178] sm:$0xff]
        %v610 = vld [vmem:[%s2 + $0x180] sm:$0xff]
        %v611 = vld [vmem:[%s2 + $0x188] sm:$0xff]
        %v612 = vld [vmem:[%s2 + $0x190] sm:$0xff]
        %v613 = vld [vmem:[%s2 + $0x198] sm:$0xff]
        %v614 = vld [vmem:[%s2 + $0x1a0] sm:$0xff]
        %v615 = vld [vmem:[%s2 + $0x1a8] sm:$0xff]
        %v616 = vld [vmem:[%s2 + $0x1b0] sm:$0xff]
        %v617 = vld [vmem:[%s2 + $0x1b8] sm:$0xff]
        %v618 = vld [vmem:[%s2 + $0x1c0] sm:$0xff]
        %v619 = vld [vmem:[%s2 + $0x1c8] sm:$0xff]
        %v620 = vld [vmem:[%s2 + $0x1d0] sm:$0xff]
        %v621 = vld [vmem:[%s2 + $0x1d8] sm:$0xff]
        %v622 = vld [vmem:[%s2 + $0x1e0] sm:$0xff]
        %v623 = vld [vmem:[%s2 + $0x1e8] sm:$0xff]
        %v624 = vld [vmem:[%s2 + $0x1f0] sm:$0xff]
        %v625 = vld [vmem:[%s2 + $0x1f8] sm:$0xff]
        %v626 = vld [vmem:[%s2 + $0x200] sm:$0xff]
        %v627 = vld [vmem:[%s2 + $0x208] sm:$0xff]
        %v628 = vld [vmem:[%s2 + $0x210] sm:$0xff]
        %v629 = vld [vmem:[%s2 + $0x218] sm:$0xff]
        %v630 = vld [vmem:[%s2 + $0x220] sm:$0xff]
        %v631 = vld [vmem:[%s2 + $0x228] sm:$0xff]
        %v632 = vld [vmem:[%s2 + $0x230] sm:$0xff]
        %v633 = vld [vmem:[%s2 + $0x238] sm:$0xff]
        %v634 = vld [vmem:[%s2 + $0x240] sm:$0xff]
        %v635 = vld [vmem:[%s2 + $0x248] sm:$0xff]
        %v636 = vld [vmem:[%s2 + $0x250] sm:$0xff]
        %v637 = vld [vmem:[%s2 + $0x258] sm:$0xff]
        %v638 = vld [vmem:[%s2 + $0x260] sm:$0xff]
        %v639 = vld [vmem:[%s2 + $0x268] sm:$0xff]
        %v640 = vld [vmem:[%s2 + $0x270] sm:$0xff]
        %v641 = vld [vmem:[%s2 + $0x278] sm:$0xff]
        %v642 = vld [vmem:[%s2 + $0x280] sm:$0xff]
        %v643 = vld [vmem:[%s2 + $0x288] sm:$0xff]
        %v644 = vld [vmem:[%s2 + $0x290] sm:$0xff]
        %v645 = vld [vmem:[%s2 + $0x298] sm:$0xff]
        %v646 = vld [vmem:[%s3] sm:$0xff]
        %v647 = vld [vmem:[%s3 + $0x8] sm:$0xff]
        %v648 = vld [vmem:[%s3 + $0x10] sm:$0xff]
        %v649 = vld [vmem:[%s3 + $0x18] sm:$0xff]
        %v650 = vld [vmem:[%s3 + $0x20] sm:$0xff]
        %v651 = vld [vmem:[%s3 + $0x28] sm:$0xff]
        %v652 = vld [vmem:[%s3 + $0x30] sm:$0xff]
        %v653 = vld [vmem:[%s3 + $0x38] sm:$0xff]
        %v654 = vld [vmem:[%s3 + $0x40] sm:$0xff]
        %v655 = vld [vmem:[%s3 + $0x48] sm:$0xff]
        %v656 = vld [vmem:[%s3 + $0x50] sm:$0xff]
        %v657 = vld [vmem:[%s3 + $0x58] sm:$0xff]
        %v658 = vld [vmem:[%s3 + $0x60] sm:$0xff]
        %v659 = vld [vmem:[%s3 + $0x68] sm:$0xff]
        %v660 = vld [vmem:[%s3 + $0x70] sm:$0xff]
        %v661 = vld [vmem:[%s3 + $0x78] sm:$0xff]
        %v662 = vld [vmem:[%s3 + $0x80] sm:$0xff]
        %v663 = vld [vmem:[%s3 + $0x88] sm:$0xff]
        %v664 = vld [vmem:[%s3 + $0x90] sm:$0xff]
        %v665 = vld [vmem:[%s3 + $0x98] sm:$0xff]
        %v666 = vld [vmem:[%s3 + $0xa0] sm:$0xff]
        %v667 = vld [vmem:[%s3 + $0xa8] sm:$0xff]
        %v668 = vld [vmem:[%s3 + $0xb0] sm:$0xff]
        %v669 = vld [vmem:[%s3 + $0xb8] sm:$0xff]
        %v670 = vld [vmem:[%s3 + $0xc0] sm:$0xff]
        %v671 = vld [vmem:[%s3 + $0xc8] sm:$0xff]
        %v672 = vld [vmem:[%s3 + $0xd0] sm:$0xff]
        %v673 = vld [vmem:[%s3 + $0xd8] sm:$0xff]
        %v674 = vld [vmem:[%s3 + $0xe0] sm:$0xff]
        %v675 = vld [vmem:[%s3 + $0xe8] sm:$0xff]
        %v676 = vld [vmem:[%s3 + $0xf0] sm:$0xff]
        %v677 = vld [vmem:[%s3 + $0xf8] sm:$0xff]
        %v678 = vld [vmem:[%s3 + $0x100] sm:$0xff]
        %v679 = vld [vmem:[%s3 + $0x108] sm:$0xff]
        %v680 = vld [vmem:[%s3 + $0x110] sm:$0xff]
        %v681 = vld [vmem:[%s3 + $0x118] sm:$0xff]
        %v682 = vld [vmem:[%s3 + $0x120] sm:$0xff]
        %v683 = vld [vmem:[%s3 + $0x128] sm:$0xff]
        %v684 = vld [vmem:[%s3 + $0x130] sm:$0xff]
        %v685 = vld [vmem:[%s3 + $0x138] sm:$0xff]
        %v686 = vld [vmem:[%s3 + $0x140] sm:$0xff]
        %v687 = vld [vmem:[%s3 + $0x148] sm:$0xff]
        %v688 = vld [vmem:[%s3 + $0x150] sm:$0xff]
        %v689 = vld [vmem:[%s3 + $0x158] sm:$0xff]
        %v690 = vld [vmem:[%s3 + $0x160] sm:$0xff]
        %v691 = vld [vmem:[%s3 + $0x168] sm:$0xff]
        %v692 = vld [vmem:[%s3 + $0x170] sm:$0xff]
        %v693 = vld [vmem:[%s3 + $0x178] sm:$0xff]
        %v694 = vld [vmem:[%s3 + $0x180] sm:$0xff]
        %v695 = vld [vmem:[%s3 + $0x188] sm:$0xff]
        %v696 = vld [vmem:[%s3 + $0x190] sm:$0xff]
        %v697 = vld [vmem:[%s3 + $0x198] sm:$0xff]
        %v698 = vld [vmem:[%s3 + $0x1a0] sm:$0xff]
        %v699 = vld [vmem:[%s3 + $0x1a8] sm:$0xff]
        %v700 = vld [vmem:[%s3 + $0x1b0] sm:$0xff]
        %v701 = vld [vmem:[%s3 + $0x1b8] sm:$0xff]
        %v702 = vld [vmem:[%s3 + $0x1c0] sm:$0xff]
        %v703 = vld [vmem:[%s3 + $0x1c8] sm:$0xff]
        %v704 = vld [vmem:[%s3 + $0x1d0] sm:$0xff]
        %v705 = vld [vmem:[%s3 + $0x1d8] sm:$0xff]
        %v706 = vld [vmem:[%s3 + $0x1e0] sm:$0xff]
        %v707 = vld [vmem:[%s3 + $0x1e8] sm:$0xff]
        %v708 = vld [vmem:[%s3 + $0x1f0] sm:$0xff]
        %v709 = vld [vmem:[%s3 + $0x1f8] sm:$0xff]
        %v710 = vld [vmem:[%s3 + $0x200] sm:$0xff]
        %v711 = vld [vmem:[%s3 + $0x208] sm:$0xff]
        %v712 = vld [vmem:[%s3 + $0x210] sm:$0xff]
        %v713 = vld [vmem:[%s3 + $0x218] sm:$0xff]
        %v714 = vld [vmem:[%s3 + $0x220] sm:$0xff]
        %v715 = vld [vmem:[%s3 + $0x228] sm:$0xff]
        %v716 = vld [vmem:[%s3 + $0x230] sm:$0xff]
        %v717 = vld [vmem:[%s3 + $0x238] sm:$0xff]
        %v718 = vld [vmem:[%s3 + $0x240] sm:$0xff]
        %v719 = vld [vmem:[%s3 + $0x248] sm:$0xff]
        %v720 = vld [vmem:[%s3 + $0x250] sm:$0xff]
        %v721 = vld [vmem:[%s3 + $0x258] sm:$0xff]
        %v722 = vld [vmem:[%s3 + $0x260] sm:$0xff]
        %v723 = vld [vmem:[%s3 + $0x268] sm:$0xff]
        %v724 = vld [vmem:[%s3 + $0x270] sm:$0xff]
        %v725 = vld [vmem:[%s3 + $0x278] sm:$0xff]
        %v726 = vld [vmem:[%s3 + $0x280] sm:$0xff]
        %v727 = vld [vmem:[%s3 + $0x288] sm:$0xff]
        %v728 = vld [vmem:[%s3 + $0x290] sm:$0xff]
        %v729 = vld [vmem:[%s3 + $0x298] sm:$0xff]
        %vm730 = vcmask 392192
        %v732 = vsel %vm730, %v646, 0
        %v735 = vsel %vm730, %v647, 0
        %v738 = vsel %vm730, %v648, 0
        %v741 = vsel %vm730, %v649, 0
        %v744 = vsel %vm730, %v650, 0
        %v747 = vsel %vm730, %v651, 0
        %v750 = vsel %vm730, %v652, 0
        %v753 = vsel %vm730, %v653, 0
        %v756 = vsel %vm730, %v654, 0
        %v759 = vsel %vm730, %v655, 0
        %v762 = vsel %vm730, %v656, 0
        %v765 = vsel %vm730, %v657, 0
        %v768 = vsel %vm730, %v658, 0
        %v771 = vsel %vm730, %v659, 0
        %v774 = vsel %vm730, %v660, 0
        %v777 = vsel %vm730, %v661, 0
        %v780 = vsel %vm730, %v662, 0
        %v783 = vsel %vm730, %v663, 0
        %v786 = vsel %vm730, %v664, 0
        %v789 = vsel %vm730, %v665, 0
        %v792 = vsel %vm730, %v666, 0
        %v795 = vsel %vm730, %v667, 0
        %v798 = vsel %vm730, %v668, 0
        %v801 = vsel %vm730, %v669, 0
        %v804 = vsel %vm730, %v670, 0
        %v807 = vsel %vm730, %v671, 0
        %v810 = vsel %vm730, %v672, 0
        %v813 = vsel %vm730, %v673, 0
        %v816 = vsel %vm730, %v674, 0
        %v819 = vsel %vm730, %v675, 0
        %v822 = vsel %vm730, %v676, 0
        %v825 = vsel %vm730, %v677, 0
        %v828 = vsel %vm730, %v678, 0
        %v831 = vsel %vm730, %v679, 0
        %v834 = vsel %vm730, %v680, 0
        %v837 = vsel %vm730, %v681, 0
        %v840 = vsel %vm730, %v682, 0
        %v843 = vsel %vm730, %v683, 0
        %v846 = vsel %vm730, %v684, 0
        %v849 = vsel %vm730, %v685, 0
        %v852 = vsel %vm730, %v686, 0
        %v855 = vsel %vm730, %v687, 0
        %v858 = vsel %vm730, %v688, 0
        %v861 = vsel %vm730, %v689, 0
        %v864 = vsel %vm730, %v690, 0
        %v867 = vsel %vm730, %v691, 0
        %v870 = vsel %vm730, %v692, 0
        %v873 = vsel %vm730, %v693, 0
        %v876 = vsel %vm730, %v694, 0
        %v879 = vsel %vm730, %v695, 0
        %v882 = vsel %vm730, %v696, 0
        %v885 = vsel %vm730, %v697, 0
        %v888 = vsel %vm730, %v698, 0
        %v891 = vsel %vm730, %v699, 0
        %v894 = vsel %vm730, %v700, 0
        %v897 = vsel %vm730, %v701, 0
        %v900 = vsel %vm730, %v702, 0
        %v903 = vsel %vm730, %v703, 0
        %v906 = vsel %vm730, %v704, 0
        %v909 = vsel %vm730, %v705, 0
        %v912 = vsel %vm730, %v706, 0
        %v915 = vsel %vm730, %v707, 0
        %v918 = vsel %vm730, %v708, 0
        %v921 = vsel %vm730, %v709, 0
        %v924 = vsel %vm730, %v710, 0
        %v927 = vsel %vm730, %v711, 0
        %v930 = vsel %vm730, %v712, 0
        %v933 = vsel %vm730, %v713, 0
        %v936 = vsel %vm730, %v714, 0
        %v939 = vsel %vm730, %v715, 0
        %v942 = vsel %vm730, %v716, 0
        %v945 = vsel %vm730, %v717, 0
        %v948 = vsel %vm730, %v718, 0
        %v951 = vsel %vm730, %v719, 0
        %v954 = vsel %vm730, %v720, 0
        %v957 = vsel %vm730, %v721, 0
        %v960 = vsel %vm730, %v722, 0
        %v963 = vsel %vm730, %v723, 0
        %v966 = vsel %vm730, %v724, 0
        %v969 = vsel %vm730, %v725, 0
        %v972 = vsel %vm730, %v726, 0
        %v975 = vsel %vm730, %v727, 0
        %v978 = vsel %vm730, %v728, 0
        %v981 = vsel %vm730, %v729, 0
        %983 = vmatpush.msra.mxu0 0.0
        %984 = vmatpush.msra.mxu0 0.0
        %985 = vmatpush.msra.mxu0 0.0
        %986 = vmatpush.msra.mxu0 0.0
        %987 = vmatpush.msra.mxu0 0.0
        %988 = vmatpush.msra.mxu0 0.0
        %989 = vmatpush.msra.mxu0 0.0
        %990 = vmatpush.msra.mxu0 0.0
        %991 = vmatpush.msra.mxu0 0.0
        %992 = vmatpush.msra.mxu0 0.0
        %993 = vmatpush.msra.mxu0 %v525
        %994 = vmatpush.msra.mxu0 %v522
        %995 = vmatpush.msra.mxu0 %v519
        %996 = vmatpush.msra.mxu0 %v516
        %997 = vmatpush.msra.mxu0 %v513
        %998 = vmatpush.msra.mxu0 %v510
        %999 = vmatmul.f32.gmra.mxu0 %v732
        %v1000 = vpop.f32.mrf.mxu0
        %v1001 = vadd.f32 0.0, %v1000
        %1002 = vmatmul.f32.gmra.mxu0 %v735
        %v1003 = vpop.f32.mrf.mxu0
        %v1004 = vadd.f32 0.0, %v1003
        %1005 = vmatmul.f32.gmra.mxu0 %v738
        %v1006 = vpop.f32.mrf.mxu0
        %v1007 = vadd.f32 0.0, %v1006
        %1008 = vmatmul.f32.gmra.mxu0 %v741
        %v1009 = vpop.f32.mrf.mxu0
        %v1010 = vadd.f32 0.0, %v1009
        %1011 = vmatmul.f32.gmra.mxu0 %v744
        %v1012 = vpop.f32.mrf.mxu0
        %v1013 = vadd.f32 0.0, %v1012
        %1014 = vmatmul.f32.gmra.mxu0 %v747
        %v1015 = vpop.f32.mrf.mxu0
        %v1016 = vadd.f32 0.0, %v1015
        %1017 = vmatmul.f32.gmra.mxu0 %v750
        %v1018 = vpop.f32.mrf.mxu0
        %v1019 = vadd.f32 0.0, %v1018
        %1020 = vmatmul.f32.gmra.mxu0 %v753
        %v1021 = vpop.f32.mrf.mxu0
        %v1022 = vadd.f32 0.0, %v1021
        %1023 = vmatmul.f32.gmra.mxu0 %v756
        %v1024 = vpop.f32.mrf.mxu0
        %v1025 = vadd.f32 0.0, %v1024
        %1026 = vmatmul.f32.gmra.mxu0 %v759
        %v1027 = vpop.f32.mrf.mxu0
        %v1028 = vadd.f32 0.0, %v1027
        %1029 = vmatmul.f32.gmra.mxu0 %v762
        %v1030 = vpop.f32.mrf.mxu0
        %v1031 = vadd.f32 0.0, %v1030
        %1032 = vmatmul.f32.gmra.mxu0 %v765
        %v1033 = vpop.f32.mrf.mxu0
        %v1034 = vadd.f32 0.0, %v1033
        %1035 = vmatmul.f32.gmra.mxu0 %v768
        %v1036 = vpop.f32.mrf.mxu0
        %v1037 = vadd.f32 0.0, %v1036
        %1038 = vmatmul.f32.gmra.mxu0 %v771
        %v1039 = vpop.f32.mrf.mxu0
        %v1040 = vadd.f32 0.0, %v1039
        %1041 = vmatmul.f32.gmra.mxu0 %v774
        %v1042 = vpop.f32.mrf.mxu0
        %v1043 = vadd.f32 0.0, %v1042
        %1044 = vmatmul.f32.gmra.mxu0 %v777
        %v1045 = vpop.f32.mrf.mxu0
        %v1046 = vadd.f32 0.0, %v1045
        %1047 = vmatmul.f32.gmra.mxu0 %v780
        %v1048 = vpop.f32.mrf.mxu0
        %v1049 = vadd.f32 0.0, %v1048
        %1050 = vmatmul.f32.gmra.mxu0 %v783
        %v1051 = vpop.f32.mrf.mxu0
        %v1052 = vadd.f32 0.0, %v1051
        %1053 = vmatmul.f32.gmra.mxu0 %v786
        %v1054 = vpop.f32.mrf.mxu0
        %v1055 = vadd.f32 0.0, %v1054
        %1056 = vmatmul.f32.gmra.mxu0 %v789
        %v1057 = vpop.f32.mrf.mxu0
        %v1058 = vadd.f32 0.0, %v1057
        %1059 = vmatmul.f32.gmra.mxu0 %v792
        %v1060 = vpop.f32.mrf.mxu0
        %v1061 = vadd.f32 0.0, %v1060
        %1062 = vmatmul.f32.gmra.mxu0 %v795
        %v1063 = vpop.f32.mrf.mxu0
        %v1064 = vadd.f32 0.0, %v1063
        %1065 = vmatmul.f32.gmra.mxu0 %v798
        %v1066 = vpop.f32.mrf.mxu0
        %v1067 = vadd.f32 0.0, %v1066
        %1068 = vmatmul.f32.gmra.mxu0 %v801
        %v1069 = vpop.f32.mrf.mxu0
        %v1070 = vadd.f32 0.0, %v1069
        %1071 = vmatmul.f32.gmra.mxu0 %v804
        %v1072 = vpop.f32.mrf.mxu0
        %v1073 = vadd.f32 0.0, %v1072
        %1074 = vmatmul.f32.gmra.mxu0 %v807
        %v1075 = vpop.f32.mrf.mxu0
        %v1076 = vadd.f32 0.0, %v1075
        %1077 = vmatmul.f32.gmra.mxu0 %v810
        %v1078 = vpop.f32.mrf.mxu0
        %v1079 = vadd.f32 0.0, %v1078
        %1080 = vmatmul.f32.gmra.mxu0 %v813
        %v1081 = vpop.f32.mrf.mxu0
        %v1082 = vadd.f32 0.0, %v1081
        %1083 = vmatmul.f32.gmra.mxu0 %v816
        %v1084 = vpop.f32.mrf.mxu0
        %v1085 = vadd.f32 0.0, %v1084
        %1086 = vmatmul.f32.gmra.mxu0 %v819
        %v1087 = vpop.f32.mrf.mxu0
        %v1088 = vadd.f32 0.0, %v1087
        %1089 = vmatmul.f32.gmra.mxu0 %v822
        %v1090 = vpop.f32.mrf.mxu0
        %v1091 = vadd.f32 0.0, %v1090
        %1092 = vmatmul.f32.gmra.mxu0 %v825
        %v1093 = vpop.f32.mrf.mxu0
        %v1094 = vadd.f32 0.0, %v1093
        %1095 = vmatmul.f32.gmra.mxu0 %v828
        %v1096 = vpop.f32.mrf.mxu0
        %v1097 = vadd.f32 0.0, %v1096
        %1098 = vmatmul.f32.gmra.mxu0 %v831
        %v1099 = vpop.f32.mrf.mxu0
        %v1100 = vadd.f32 0.0, %v1099
        %1101 = vmatmul.f32.gmra.mxu0 %v834
        %v1102 = vpop.f32.mrf.mxu0
        %v1103 = vadd.f32 0.0, %v1102
        %1104 = vmatmul.f32.gmra.mxu0 %v837
        %v1105 = vpop.f32.mrf.mxu0
        %v1106 = vadd.f32 0.0, %v1105
        %1107 = vmatmul.f32.gmra.mxu0 %v840
        %v1108 = vpop.f32.mrf.mxu0
        %v1109 = vadd.f32 0.0, %v1108
        %1110 = vmatmul.f32.gmra.mxu0 %v843
        %v1111 = vpop.f32.mrf.mxu0
        %v1112 = vadd.f32 0.0, %v1111
        %1113 = vmatmul.f32.gmra.mxu0 %v846
        %v1114 = vpop.f32.mrf.mxu0
        %v1115 = vadd.f32 0.0, %v1114
        %1116 = vmatmul.f32.gmra.mxu0 %v849
        %v1117 = vpop.f32.mrf.mxu0
        %v1118 = vadd.f32 0.0, %v1117
        %1119 = vmatmul.f32.gmra.mxu0 %v852
        %v1120 = vpop.f32.mrf.mxu0
        %v1121 = vadd.f32 0.0, %v1120
        %1122 = vmatmul.f32.gmra.mxu0 %v855
        %v1123 = vpop.f32.mrf.mxu0
        %v1124 = vadd.f32 0.0, %v1123
        %1125 = vmatmul.f32.gmra.mxu0 %v858
        %v1126 = vpop.f32.mrf.mxu0
        %v1127 = vadd.f32 0.0, %v1126
        %1128 = vmatmul.f32.gmra.mxu0 %v861
        %v1129 = vpop.f32.mrf.mxu0
        %v1130 = vadd.f32 0.0, %v1129
        %1131 = vmatmul.f32.gmra.mxu0 %v864
        %v1132 = vpop.f32.mrf.mxu0
        %v1133 = vadd.f32 0.0, %v1132
        %1134 = vmatmul.f32.gmra.mxu0 %v867
        %v1135 = vpop.f32.mrf.mxu0
        %v1136 = vadd.f32 0.0, %v1135
        %1137 = vmatmul.f32.gmra.mxu0 %v870
        %v1138 = vpop.f32.mrf.mxu0
        %v1139 = vadd.f32 0.0, %v1138
        %1140 = vmatmul.f32.gmra.mxu0 %v873
        %v1141 = vpop.f32.mrf.mxu0
        %v1142 = vadd.f32 0.0, %v1141
        %1143 = vmatmul.f32.gmra.mxu0 %v876
        %v1144 = vpop.f32.mrf.mxu0
        %v1145 = vadd.f32 0.0, %v1144
        %1146 = vmatmul.f32.gmra.mxu0 %v879
        %v1147 = vpop.f32.mrf.mxu0
        %v1148 = vadd.f32 0.0, %v1147
        %1149 = vmatmul.f32.gmra.mxu0 %v882
        %v1150 = vpop.f32.mrf.mxu0
        %v1151 = vadd.f32 0.0, %v1150
        %1152 = vmatmul.f32.gmra.mxu0 %v885
        %v1153 = vpop.f32.mrf.mxu0
        %v1154 = vadd.f32 0.0, %v1153
        %1155 = vmatmul.f32.gmra.mxu0 %v888
        %v1156 = vpop.f32.mrf.mxu0
        %v1157 = vadd.f32 0.0, %v1156
        %1158 = vmatmul.f32.gmra.mxu0 %v891
        %v1159 = vpop.f32.mrf.mxu0
        %v1160 = vadd.f32 0.0, %v1159
        %1161 = vmatmul.f32.gmra.mxu0 %v894
        %v1162 = vpop.f32.mrf.mxu0
        %v1163 = vadd.f32 0.0, %v1162
        %1164 = vmatmul.f32.gmra.mxu0 %v897
        %v1165 = vpop.f32.mrf.mxu0
        %v1166 = vadd.f32 0.0, %v1165
        %1167 = vmatmul.f32.gmra.mxu0 %v900
        %v1168 = vpop.f32.mrf.mxu0
        %v1169 = vadd.f32 0.0, %v1168
        %1170 = vmatmul.f32.gmra.mxu0 %v903
        %v1171 = vpop.f32.mrf.mxu0
        %v1172 = vadd.f32 0.0, %v1171
        %1173 = vmatmul.f32.gmra.mxu0 %v906
        %v1174 = vpop.f32.mrf.mxu0
        %v1175 = vadd.f32 0.0, %v1174
        %1176 = vmatmul.f32.gmra.mxu0 %v909
        %v1177 = vpop.f32.mrf.mxu0
        %v1178 = vadd.f32 0.0, %v1177
        %1179 = vmatmul.f32.gmra.mxu0 %v912
        %v1180 = vpop.f32.mrf.mxu0
        %v1181 = vadd.f32 0.0, %v1180
        %1182 = vmatmul.f32.gmra.mxu0 %v915
        %v1183 = vpop.f32.mrf.mxu0
        %v1184 = vadd.f32 0.0, %v1183
        %1185 = vmatmul.f32.gmra.mxu0 %v918
        %v1186 = vpop.f32.mrf.mxu0
        %v1187 = vadd.f32 0.0, %v1186
        %1188 = vmatmul.f32.gmra.mxu0 %v921
        %v1189 = vpop.f32.mrf.mxu0
        %v1190 = vadd.f32 0.0, %v1189
        %1191 = vmatmul.f32.gmra.mxu0 %v924
        %v1192 = vpop.f32.mrf.mxu0
        %v1193 = vadd.f32 0.0, %v1192
        %1194 = vmatmul.f32.gmra.mxu0 %v927
        %v1195 = vpop.f32.mrf.mxu0
        %v1196 = vadd.f32 0.0, %v1195
        %1197 = vmatmul.f32.gmra.mxu0 %v930
        %v1198 = vpop.f32.mrf.mxu0
        %v1199 = vadd.f32 0.0, %v1198
        %1200 = vmatmul.f32.gmra.mxu0 %v933
        %v1201 = vpop.f32.mrf.mxu0
        %v1202 = vadd.f32 0.0, %v1201
        %1203 = vmatmul.f32.gmra.mxu0 %v936
        %v1204 = vpop.f32.mrf.mxu0
        %v1205 = vadd.f32 0.0, %v1204
        %1206 = vmatmul.f32.gmra.mxu0 %v939
        %v1207 = vpop.f32.mrf.mxu0
        %v1208 = vadd.f32 0.0, %v1207
        %1209 = vmatmul.f32.gmra.mxu0 %v942
        %v1210 = vpop.f32.mrf.mxu0
        %v1211 = vadd.f32 0.0, %v1210
        %1212 = vmatmul.f32.gmra.mxu0 %v945
        %v1213 = vpop.f32.mrf.mxu0
        %v1214 = vadd.f32 0.0, %v1213
        %1215 = vmatmul.f32.gmra.mxu0 %v948
        %v1216 = vpop.f32.mrf.mxu0
        %v1217 = vadd.f32 0.0, %v1216
        %1218 = vmatmul.f32.gmra.mxu0 %v951
        %v1219 = vpop.f32.mrf.mxu0
        %v1220 = vadd.f32 0.0, %v1219
        %1221 = vmatmul.f32.gmra.mxu0 %v954
        %v1222 = vpop.f32.mrf.mxu0
        %v1223 = vadd.f32 0.0, %v1222
        %1224 = vmatmul.f32.gmra.mxu0 %v957
        %v1225 = vpop.f32.mrf.mxu0
        %v1226 = vadd.f32 0.0, %v1225
        %1227 = vmatmul.f32.gmra.mxu0 %v960
        %v1228 = vpop.f32.mrf.mxu0
        %v1229 = vadd.f32 0.0, %v1228
        %1230 = vmatmul.f32.gmra.mxu0 %v963
        %v1231 = vpop.f32.mrf.mxu0
        %v1232 = vadd.f32 0.0, %v1231
        %1233 = vmatmul.f32.gmra.mxu0 %v966
        %v1234 = vpop.f32.mrf.mxu0
        %v1235 = vadd.f32 0.0, %v1234
        %1236 = vmatmul.f32.gmra.mxu0 %v969
        %v1237 = vpop.f32.mrf.mxu0
        %v1238 = vadd.f32 0.0, %v1237
        %1239 = vmatmul.f32.gmra.mxu0 %v972
        %v1240 = vpop.f32.mrf.mxu0
        %v1241 = vadd.f32 0.0, %v1240
        %1242 = vmatmul.f32.gmra.mxu0 %v975
        %v1243 = vpop.f32.mrf.mxu0
        %v1244 = vadd.f32 0.0, %v1243
        %1245 = vmatmul.f32.gmra.mxu0 %v978
        %v1246 = vpop.f32.mrf.mxu0
        %v1247 = vadd.f32 0.0, %v1246
        %1248 = vmatmul.f32.gmra.mxu0 %v981
        %v1249 = vpop.f32.mrf.mxu0
        %v1250 = vadd.f32 0.0, %v1249
        %1251 = vdwg.mxu0
        %1252 = vmatpush.msra.mxu0 0.0
        %1253 = vmatpush.msra.mxu0 0.0
        %1254 = vmatpush.msra.mxu0 0.0
        %1255 = vmatpush.msra.mxu0 0.0
        %1256 = vmatpush.msra.mxu0 0.0
        %1257 = vmatpush.msra.mxu0 0.0
        %1258 = vmatpush.msra.mxu0 0.0
        %1259 = vmatpush.msra.mxu0 0.0
        %1260 = vmatpush.msra.mxu0 0.0
        %1261 = vmatpush.msra.mxu0 0.0
        %1262 = vmatpush.msra.mxu0 %v560
        %1263 = vmatpush.msra.mxu0 %v557
        %1264 = vmatpush.msra.mxu0 %v554
        %1265 = vmatpush.msra.mxu0 %v551
        %1266 = vmatpush.msra.mxu0 %v548
        %1267 = vmatpush.msra.mxu0 %v545
        %1268 = vmatmul.f32.gmra.mxu0 %v732
        %v1269 = vpop.f32.mrf.mxu0
        %v1270 = vadd.f32 0.0, %v1269
        %1271 = vmatmul.f32.gmra.mxu0 %v735
        %v1272 = vpop.f32.mrf.mxu0
        %v1273 = vadd.f32 0.0, %v1272
        %1274 = vmatmul.f32.gmra.mxu0 %v738
        %v1275 = vpop.f32.mrf.mxu0
        %v1276 = vadd.f32 0.0, %v1275
        %1277 = vmatmul.f32.gmra.mxu0 %v741
        %v1278 = vpop.f32.mrf.mxu0
        %v1279 = vadd.f32 0.0, %v1278
        %1280 = vmatmul.f32.gmra.mxu0 %v744
        %v1281 = vpop.f32.mrf.mxu0
        %v1282 = vadd.f32 0.0, %v1281
        %1283 = vmatmul.f32.gmra.mxu0 %v747
        %v1284 = vpop.f32.mrf.mxu0
        %v1285 = vadd.f32 0.0, %v1284
        %1286 = vmatmul.f32.gmra.mxu0 %v750
        %v1287 = vpop.f32.mrf.mxu0
        %v1288 = vadd.f32 0.0, %v1287
        %1289 = vmatmul.f32.gmra.mxu0 %v753
        %v1290 = vpop.f32.mrf.mxu0
        %v1291 = vadd.f32 0.0, %v1290
        %1292 = vmatmul.f32.gmra.mxu0 %v756
        %v1293 = vpop.f32.mrf.mxu0
        %v1294 = vadd.f32 0.0, %v1293
        %1295 = vmatmul.f32.gmra.mxu0 %v759
        %v1296 = vpop.f32.mrf.mxu0
        %v1297 = vadd.f32 0.0, %v1296
        %1298 = vmatmul.f32.gmra.mxu0 %v762
        %v1299 = vpop.f32.mrf.mxu0
        %v1300 = vadd.f32 0.0, %v1299
        %1301 = vmatmul.f32.gmra.mxu0 %v765
        %v1302 = vpop.f32.mrf.mxu0
        %v1303 = vadd.f32 0.0, %v1302
        %1304 = vmatmul.f32.gmra.mxu0 %v768
        %v1305 = vpop.f32.mrf.mxu0
        %v1306 = vadd.f32 0.0, %v1305
        %1307 = vmatmul.f32.gmra.mxu0 %v771
        %v1308 = vpop.f32.mrf.mxu0
        %v1309 = vadd.f32 0.0, %v1308
        %1310 = vmatmul.f32.gmra.mxu0 %v774
        %v1311 = vpop.f32.mrf.mxu0
        %v1312 = vadd.f32 0.0, %v1311
        %1313 = vmatmul.f32.gmra.mxu0 %v777
        %v1314 = vpop.f32.mrf.mxu0
        %v1315 = vadd.f32 0.0, %v1314
        %1316 = vmatmul.f32.gmra.mxu0 %v780
        %v1317 = vpop.f32.mrf.mxu0
        %v1318 = vadd.f32 0.0, %v1317
        %1319 = vmatmul.f32.gmra.mxu0 %v783
        %v1320 = vpop.f32.mrf.mxu0
        %v1321 = vadd.f32 0.0, %v1320
        %1322 = vmatmul.f32.gmra.mxu0 %v786
        %v1323 = vpop.f32.mrf.mxu0
        %v1324 = vadd.f32 0.0, %v1323
        %1325 = vmatmul.f32.gmra.mxu0 %v789
        %v1326 = vpop.f32.mrf.mxu0
        %v1327 = vadd.f32 0.0, %v1326
        %1328 = vmatmul.f32.gmra.mxu0 %v792
        %v1329 = vpop.f32.mrf.mxu0
        %v1330 = vadd.f32 0.0, %v1329
        %1331 = vmatmul.f32.gmra.mxu0 %v795
        %v1332 = vpop.f32.mrf.mxu0
        %v1333 = vadd.f32 0.0, %v1332
        %1334 = vmatmul.f32.gmra.mxu0 %v798
        %v1335 = vpop.f32.mrf.mxu0
        %v1336 = vadd.f32 0.0, %v1335
        %1337 = vmatmul.f32.gmra.mxu0 %v801
        %v1338 = vpop.f32.mrf.mxu0
        %v1339 = vadd.f32 0.0, %v1338
        %1340 = vmatmul.f32.gmra.mxu0 %v804
        %v1341 = vpop.f32.mrf.mxu0
        %v1342 = vadd.f32 0.0, %v1341
        %1343 = vmatmul.f32.gmra.mxu0 %v807
        %v1344 = vpop.f32.mrf.mxu0
        %v1345 = vadd.f32 0.0, %v1344
        %1346 = vmatmul.f32.gmra.mxu0 %v810
        %v1347 = vpop.f32.mrf.mxu0
        %v1348 = vadd.f32 0.0, %v1347
        %1349 = vmatmul.f32.gmra.mxu0 %v813
        %v1350 = vpop.f32.mrf.mxu0
        %v1351 = vadd.f32 0.0, %v1350
        %1352 = vmatmul.f32.gmra.mxu0 %v816
        %v1353 = vpop.f32.mrf.mxu0
        %v1354 = vadd.f32 0.0, %v1353
        %1355 = vmatmul.f32.gmra.mxu0 %v819
        %v1356 = vpop.f32.mrf.mxu0
        %v1357 = vadd.f32 0.0, %v1356
        %1358 = vmatmul.f32.gmra.mxu0 %v822
        %v1359 = vpop.f32.mrf.mxu0
        %v1360 = vadd.f32 0.0, %v1359
        %1361 = vmatmul.f32.gmra.mxu0 %v825
        %v1362 = vpop.f32.mrf.mxu0
        %v1363 = vadd.f32 0.0, %v1362
        %1364 = vmatmul.f32.gmra.mxu0 %v828
        %v1365 = vpop.f32.mrf.mxu0
        %v1366 = vadd.f32 0.0, %v1365
        %1367 = vmatmul.f32.gmra.mxu0 %v831
        %v1368 = vpop.f32.mrf.mxu0
        %v1369 = vadd.f32 0.0, %v1368
        %1370 = vmatmul.f32.gmra.mxu0 %v834
        %v1371 = vpop.f32.mrf.mxu0
        %v1372 = vadd.f32 0.0, %v1371
        %1373 = vmatmul.f32.gmra.mxu0 %v837
        %v1374 = vpop.f32.mrf.mxu0
        %v1375 = vadd.f32 0.0, %v1374
        %1376 = vmatmul.f32.gmra.mxu0 %v840
        %v1377 = vpop.f32.mrf.mxu0
        %v1378 = vadd.f32 0.0, %v1377
        %1379 = vmatmul.f32.gmra.mxu0 %v843
        %v1380 = vpop.f32.mrf.mxu0
        %v1381 = vadd.f32 0.0, %v1380
        %1382 = vmatmul.f32.gmra.mxu0 %v846
        %v1383 = vpop.f32.mrf.mxu0
        %v1384 = vadd.f32 0.0, %v1383
        %1385 = vmatmul.f32.gmra.mxu0 %v849
        %v1386 = vpop.f32.mrf.mxu0
        %v1387 = vadd.f32 0.0, %v1386
        %1388 = vmatmul.f32.gmra.mxu0 %v852
        %v1389 = vpop.f32.mrf.mxu0
        %v1390 = vadd.f32 0.0, %v1389
        %1391 = vmatmul.f32.gmra.mxu0 %v855
        %v1392 = vpop.f32.mrf.mxu0
        %v1393 = vadd.f32 0.0, %v1392
        %1394 = vmatmul.f32.gmra.mxu0 %v858
        %v1395 = vpop.f32.mrf.mxu0
        %v1396 = vadd.f32 0.0, %v1395
        %1397 = vmatmul.f32.gmra.mxu0 %v861
        %v1398 = vpop.f32.mrf.mxu0
        %v1399 = vadd.f32 0.0, %v1398
        %1400 = vmatmul.f32.gmra.mxu0 %v864
        %v1401 = vpop.f32.mrf.mxu0
        %v1402 = vadd.f32 0.0, %v1401
        %1403 = vmatmul.f32.gmra.mxu0 %v867
        %v1404 = vpop.f32.mrf.mxu0
        %v1405 = vadd.f32 0.0, %v1404
        %1406 = vmatmul.f32.gmra.mxu0 %v870
        %v1407 = vpop.f32.mrf.mxu0
        %v1408 = vadd.f32 0.0, %v1407
        %1409 = vmatmul.f32.gmra.mxu0 %v873
        %v1410 = vpop.f32.mrf.mxu0
        %v1411 = vadd.f32 0.0, %v1410
        %1412 = vmatmul.f32.gmra.mxu0 %v876
        %v1413 = vpop.f32.mrf.mxu0
        %v1414 = vadd.f32 0.0, %v1413
        %1415 = vmatmul.f32.gmra.mxu0 %v879
        %v1416 = vpop.f32.mrf.mxu0
        %v1417 = vadd.f32 0.0, %v1416
        %1418 = vmatmul.f32.gmra.mxu0 %v882
        %v1419 = vpop.f32.mrf.mxu0
        %v1420 = vadd.f32 0.0, %v1419
        %1421 = vmatmul.f32.gmra.mxu0 %v885
        %v1422 = vpop.f32.mrf.mxu0
        %v1423 = vadd.f32 0.0, %v1422
        %1424 = vmatmul.f32.gmra.mxu0 %v888
        %v1425 = vpop.f32.mrf.mxu0
        %v1426 = vadd.f32 0.0, %v1425
        %1427 = vmatmul.f32.gmra.mxu0 %v891
        %v1428 = vpop.f32.mrf.mxu0
        %v1429 = vadd.f32 0.0, %v1428
        %1430 = vmatmul.f32.gmra.mxu0 %v894
        %v1431 = vpop.f32.mrf.mxu0
        %v1432 = vadd.f32 0.0, %v1431
        %1433 = vmatmul.f32.gmra.mxu0 %v897
        %v1434 = vpop.f32.mrf.mxu0
        %v1435 = vadd.f32 0.0, %v1434
        %1436 = vmatmul.f32.gmra.mxu0 %v900
        %v1437 = vpop.f32.mrf.mxu0
        %v1438 = vadd.f32 0.0, %v1437
        %1439 = vmatmul.f32.gmra.mxu0 %v903
        %v1440 = vpop.f32.mrf.mxu0
        %v1441 = vadd.f32 0.0, %v1440
        %1442 = vmatmul.f32.gmra.mxu0 %v906
        %v1443 = vpop.f32.mrf.mxu0
        %v1444 = vadd.f32 0.0, %v1443
        %1445 = vmatmul.f32.gmra.mxu0 %v909
        %v1446 = vpop.f32.mrf.mxu0
        %v1447 = vadd.f32 0.0, %v1446
        %1448 = vmatmul.f32.gmra.mxu0 %v912
        %v1449 = vpop.f32.mrf.mxu0
        %v1450 = vadd.f32 0.0, %v1449
        %1451 = vmatmul.f32.gmra.mxu0 %v915
        %v1452 = vpop.f32.mrf.mxu0
        %v1453 = vadd.f32 0.0, %v1452
        %1454 = vmatmul.f32.gmra.mxu0 %v918
        %v1455 = vpop.f32.mrf.mxu0
        %v1456 = vadd.f32 0.0, %v1455
        %1457 = vmatmul.f32.gmra.mxu0 %v921
        %v1458 = vpop.f32.mrf.mxu0
        %v1459 = vadd.f32 0.0, %v1458
        %1460 = vmatmul.f32.gmra.mxu0 %v924
        %v1461 = vpop.f32.mrf.mxu0
        %v1462 = vadd.f32 0.0, %v1461
        %1463 = vmatmul.f32.gmra.mxu0 %v927
        %v1464 = vpop.f32.mrf.mxu0
        %v1465 = vadd.f32 0.0, %v1464
        %1466 = vmatmul.f32.gmra.mxu0 %v930
        %v1467 = vpop.f32.mrf.mxu0
        %v1468 = vadd.f32 0.0, %v1467
        %1469 = vmatmul.f32.gmra.mxu0 %v933
        %v1470 = vpop.f32.mrf.mxu0
        %v1471 = vadd.f32 0.0, %v1470
        %1472 = vmatmul.f32.gmra.mxu0 %v936
        %v1473 = vpop.f32.mrf.mxu0
        %v1474 = vadd.f32 0.0, %v1473
        %1475 = vmatmul.f32.gmra.mxu0 %v939
        %v1476 = vpop.f32.mrf.mxu0
        %v1477 = vadd.f32 0.0, %v1476
        %1478 = vmatmul.f32.gmra.mxu0 %v942
        %v1479 = vpop.f32.mrf.mxu0
        %v1480 = vadd.f32 0.0, %v1479
        %1481 = vmatmul.f32.gmra.mxu0 %v945
        %v1482 = vpop.f32.mrf.mxu0
        %v1483 = vadd.f32 0.0, %v1482
        %1484 = vmatmul.f32.gmra.mxu0 %v948
        %v1485 = vpop.f32.mrf.mxu0
        %v1486 = vadd.f32 0.0, %v1485
        %1487 = vmatmul.f32.gmra.mxu0 %v951
        %v1488 = vpop.f32.mrf.mxu0
        %v1489 = vadd.f32 0.0, %v1488
        %1490 = vmatmul.f32.gmra.mxu0 %v954
        %v1491 = vpop.f32.mrf.mxu0
        %v1492 = vadd.f32 0.0, %v1491
        %1493 = vmatmul.f32.gmra.mxu0 %v957
        %v1494 = vpop.f32.mrf.mxu0
        %v1495 = vadd.f32 0.0, %v1494
        %1496 = vmatmul.f32.gmra.mxu0 %v960
        %v1497 = vpop.f32.mrf.mxu0
        %v1498 = vadd.f32 0.0, %v1497
        %1499 = vmatmul.f32.gmra.mxu0 %v963
        %v1500 = vpop.f32.mrf.mxu0
        %v1501 = vadd.f32 0.0, %v1500
        %1502 = vmatmul.f32.gmra.mxu0 %v966
        %v1503 = vpop.f32.mrf.mxu0
        %v1504 = vadd.f32 0.0, %v1503
        %1505 = vmatmul.f32.gmra.mxu0 %v969
        %v1506 = vpop.f32.mrf.mxu0
        %v1507 = vadd.f32 0.0, %v1506
        %1508 = vmatmul.f32.gmra.mxu0 %v972
        %v1509 = vpop.f32.mrf.mxu0
        %v1510 = vadd.f32 0.0, %v1509
        %1511 = vmatmul.f32.gmra.mxu0 %v975
        %v1512 = vpop.f32.mrf.mxu0
        %v1513 = vadd.f32 0.0, %v1512
        %1514 = vmatmul.f32.gmra.mxu0 %v978
        %v1515 = vpop.f32.mrf.mxu0
        %v1516 = vadd.f32 0.0, %v1515
        %1517 = vmatmul.f32.gmra.mxu0 %v981
        %v1518 = vpop.f32.mrf.mxu0
        %v1519 = vadd.f32 0.0, %v1518
        %1520 = vdwg.mxu0
        %v1522 = vsel %vm730, %v562, 0
        %v1525 = vsel %vm730, %v563, 0
        %v1528 = vsel %vm730, %v564, 0
        %v1531 = vsel %vm730, %v565, 0
        %v1534 = vsel %vm730, %v566, 0
        %v1537 = vsel %vm730, %v567, 0
        %v1540 = vsel %vm730, %v568, 0
        %v1543 = vsel %vm730, %v569, 0
        %v1546 = vsel %vm730, %v570, 0
        %v1549 = vsel %vm730, %v571, 0
        %v1552 = vsel %vm730, %v572, 0
        %v1555 = vsel %vm730, %v573, 0
        %v1558 = vsel %vm730, %v574, 0
        %v1561 = vsel %vm730, %v575, 0
        %v1564 = vsel %vm730, %v576, 0
        %v1567 = vsel %vm730, %v577, 0
        %v1570 = vsel %vm730, %v578, 0
        %v1573 = vsel %vm730, %v579, 0
        %v1576 = vsel %vm730, %v580, 0
        %v1579 = vsel %vm730, %v581, 0
        %v1582 = vsel %vm730, %v582, 0
        %v1585 = vsel %vm730, %v583, 0
        %v1588 = vsel %vm730, %v584, 0
        %v1591 = vsel %vm730, %v585, 0
        %v1594 = vsel %vm730, %v586, 0
        %v1597 = vsel %vm730, %v587, 0
        %v1600 = vsel %vm730, %v588, 0
        %v1603 = vsel %vm730, %v589, 0
        %v1606 = vsel %vm730, %v590, 0
        %v1609 = vsel %vm730, %v591, 0
        %v1612 = vsel %vm730, %v592, 0
        %v1615 = vsel %vm730, %v593, 0
        %v1618 = vsel %vm730, %v594, 0
        %v1621 = vsel %vm730, %v595, 0
        %v1624 = vsel %vm730, %v596, 0
        %v1627 = vsel %vm730, %v597, 0
        %v1630 = vsel %vm730, %v598, 0
        %v1633 = vsel %vm730, %v599, 0
        %v1636 = vsel %vm730, %v600, 0
        %v1639 = vsel %vm730, %v601, 0
        %v1642 = vsel %vm730, %v602, 0
        %v1645 = vsel %vm730, %v603, 0
        %v1648 = vsel %vm730, %v604, 0
        %v1651 = vsel %vm730, %v605, 0
        %v1654 = vsel %vm730, %v606, 0
        %v1657 = vsel %vm730, %v607, 0
        %v1660 = vsel %vm730, %v608, 0
        %v1663 = vsel %vm730, %v609, 0
        %v1666 = vsel %vm730, %v610, 0
        %v1669 = vsel %vm730, %v611, 0
        %v1672 = vsel %vm730, %v612, 0
        %v1675 = vsel %vm730, %v613, 0
        %v1678 = vsel %vm730, %v614, 0
        %v1681 = vsel %vm730, %v615, 0
        %v1684 = vsel %vm730, %v616, 0
        %v1687 = vsel %vm730, %v617, 0
        %v1690 = vsel %vm730, %v618, 0
        %v1693 = vsel %vm730, %v619, 0
        %v1696 = vsel %vm730, %v620, 0
        %v1699 = vsel %vm730, %v621, 0
        %v1702 = vsel %vm730, %v622, 0
        %v1705 = vsel %vm730, %v623, 0
        %v1708 = vsel %vm730, %v624, 0
        %v1711 = vsel %vm730, %v625, 0
        %v1714 = vsel %vm730, %v626, 0
        %v1717 = vsel %vm730, %v627, 0
        %v1720 = vsel %vm730, %v628, 0
        %v1723 = vsel %vm730, %v629, 0
        %v1726 = vsel %vm730, %v630, 0
        %v1729 = vsel %vm730, %v631, 0
        %v1732 = vsel %vm730, %v632, 0
        %v1735 = vsel %vm730, %v633, 0
        %v1738 = vsel %vm730, %v634, 0
        %v1741 = vsel %vm730, %v635, 0
        %v1744 = vsel %vm730, %v636, 0
        %v1747 = vsel %vm730, %v637, 0
        %v1750 = vsel %vm730, %v638, 0
        %v1753 = vsel %vm730, %v639, 0
        %v1756 = vsel %vm730, %v640, 0
        %v1759 = vsel %vm730, %v641, 0
        %v1762 = vsel %vm730, %v642, 0
        %v1765 = vsel %vm730, %v643, 0
        %v1768 = vsel %vm730, %v644, 0
        %v1771 = vsel %vm730, %v645, 0
        %1773 = vmatpush.msra.mxu0 0.0
        %1774 = vmatpush.msra.mxu0 0.0
        %1775 = vmatpush.msra.mxu0 0.0
        %1776 = vmatpush.msra.mxu0 0.0
        %1777 = vmatpush.msra.mxu0 0.0
        %1778 = vmatpush.msra.mxu0 0.0
        %1779 = vmatpush.msra.mxu0 0.0
        %1780 = vmatpush.msra.mxu0 0.0
        %1781 = vmatpush.msra.mxu0 0.0
        %1782 = vmatpush.msra.mxu0 0.0
        %1783 = vmatpush.msra.mxu0 %v433
        %1784 = vmatpush.msra.mxu0 %v430
        %1785 = vmatpush.msra.mxu0 %v427
        %1786 = vmatpush.msra.mxu0 %v424
        %1787 = vmatpush.msra.mxu0 %v421
        %1788 = vmatpush.msra.mxu0 %v418
        %1789 = vmatmul.f32.gmra.mxu0 %v1522
        %v1790 = vpop.f32.mrf.mxu0
        %v1791 = vadd.f32 %v1001, %v1790
        %1792 = vmatmul.f32.gmra.mxu0 %v1525
        %v1793 = vpop.f32.mrf.mxu0
        %v1794 = vadd.f32 %v1004, %v1793
        %1795 = vmatmul.f32.gmra.mxu0 %v1528
        %v1796 = vpop.f32.mrf.mxu0
        %v1797 = vadd.f32 %v1007, %v1796
        %1798 = vmatmul.f32.gmra.mxu0 %v1531
        %v1799 = vpop.f32.mrf.mxu0
        %v1800 = vadd.f32 %v1010, %v1799
        %1801 = vmatmul.f32.gmra.mxu0 %v1534
        %v1802 = vpop.f32.mrf.mxu0
        %v1803 = vadd.f32 %v1013, %v1802
        %1804 = vmatmul.f32.gmra.mxu0 %v1537
        %v1805 = vpop.f32.mrf.mxu0
        %v1806 = vadd.f32 %v1016, %v1805
        %1807 = vmatmul.f32.gmra.mxu0 %v1540
        %v1808 = vpop.f32.mrf.mxu0
        %v1809 = vadd.f32 %v1019, %v1808
        %1810 = vmatmul.f32.gmra.mxu0 %v1543
        %v1811 = vpop.f32.mrf.mxu0
        %v1812 = vadd.f32 %v1022, %v1811
        %1813 = vmatmul.f32.gmra.mxu0 %v1546
        %v1814 = vpop.f32.mrf.mxu0
        %v1815 = vadd.f32 %v1025, %v1814
        %1816 = vmatmul.f32.gmra.mxu0 %v1549
        %v1817 = vpop.f32.mrf.mxu0
        %v1818 = vadd.f32 %v1028, %v1817
        %1819 = vmatmul.f32.gmra.mxu0 %v1552
        %v1820 = vpop.f32.mrf.mxu0
        %v1821 = vadd.f32 %v1031, %v1820
        %1822 = vmatmul.f32.gmra.mxu0 %v1555
        %v1823 = vpop.f32.mrf.mxu0
        %v1824 = vadd.f32 %v1034, %v1823
        %1825 = vmatmul.f32.gmra.mxu0 %v1558
        %v1826 = vpop.f32.mrf.mxu0
        %v1827 = vadd.f32 %v1037, %v1826
        %1828 = vmatmul.f32.gmra.mxu0 %v1561
        %v1829 = vpop.f32.mrf.mxu0
        %v1830 = vadd.f32 %v1040, %v1829
        %1831 = vmatmul.f32.gmra.mxu0 %v1564
        %v1832 = vpop.f32.mrf.mxu0
        %v1833 = vadd.f32 %v1043, %v1832
        %1834 = vmatmul.f32.gmra.mxu0 %v1567
        %v1835 = vpop.f32.mrf.mxu0
        %v1836 = vadd.f32 %v1046, %v1835
        %1837 = vmatmul.f32.gmra.mxu0 %v1570
        %v1838 = vpop.f32.mrf.mxu0
        %v1839 = vadd.f32 %v1049, %v1838
        %1840 = vmatmul.f32.gmra.mxu0 %v1573
        %v1841 = vpop.f32.mrf.mxu0
        %v1842 = vadd.f32 %v1052, %v1841
        %1843 = vmatmul.f32.gmra.mxu0 %v1576
        %v1844 = vpop.f32.mrf.mxu0
        %v1845 = vadd.f32 %v1055, %v1844
        %1846 = vmatmul.f32.gmra.mxu0 %v1579
        %v1847 = vpop.f32.mrf.mxu0
        %v1848 = vadd.f32 %v1058, %v1847
        %1849 = vmatmul.f32.gmra.mxu0 %v1582
        %v1850 = vpop.f32.mrf.mxu0
        %v1851 = vadd.f32 %v1061, %v1850
        %1852 = vmatmul.f32.gmra.mxu0 %v1585
        %v1853 = vpop.f32.mrf.mxu0
        %v1854 = vadd.f32 %v1064, %v1853
        %1855 = vmatmul.f32.gmra.mxu0 %v1588
        %v1856 = vpop.f32.mrf.mxu0
        %v1857 = vadd.f32 %v1067, %v1856
        %1858 = vmatmul.f32.gmra.mxu0 %v1591
        %v1859 = vpop.f32.mrf.mxu0
        %v1860 = vadd.f32 %v1070, %v1859
        %1861 = vmatmul.f32.gmra.mxu0 %v1594
        %v1862 = vpop.f32.mrf.mxu0
        %v1863 = vadd.f32 %v1073, %v1862
        %1864 = vmatmul.f32.gmra.mxu0 %v1597
        %v1865 = vpop.f32.mrf.mxu0
        %v1866 = vadd.f32 %v1076, %v1865
        %1867 = vmatmul.f32.gmra.mxu0 %v1600
        %v1868 = vpop.f32.mrf.mxu0
        %v1869 = vadd.f32 %v1079, %v1868
        %1870 = vmatmul.f32.gmra.mxu0 %v1603
        %v1871 = vpop.f32.mrf.mxu0
        %v1872 = vadd.f32 %v1082, %v1871
        %1873 = vmatmul.f32.gmra.mxu0 %v1606
        %v1874 = vpop.f32.mrf.mxu0
        %v1875 = vadd.f32 %v1085, %v1874
        %1876 = vmatmul.f32.gmra.mxu0 %v1609
        %v1877 = vpop.f32.mrf.mxu0
        %v1878 = vadd.f32 %v1088, %v1877
        %1879 = vmatmul.f32.gmra.mxu0 %v1612
        %v1880 = vpop.f32.mrf.mxu0
        %v1881 = vadd.f32 %v1091, %v1880
        %1882 = vmatmul.f32.gmra.mxu0 %v1615
        %v1883 = vpop.f32.mrf.mxu0
        %v1884 = vadd.f32 %v1094, %v1883
        %1885 = vmatmul.f32.gmra.mxu0 %v1618
        %v1886 = vpop.f32.mrf.mxu0
        %v1887 = vadd.f32 %v1097, %v1886
        %1888 = vmatmul.f32.gmra.mxu0 %v1621
        %v1889 = vpop.f32.mrf.mxu0
        %v1890 = vadd.f32 %v1100, %v1889
        %1891 = vmatmul.f32.gmra.mxu0 %v1624
        %v1892 = vpop.f32.mrf.mxu0
        %v1893 = vadd.f32 %v1103, %v1892
        %1894 = vmatmul.f32.gmra.mxu0 %v1627
        %v1895 = vpop.f32.mrf.mxu0
        %v1896 = vadd.f32 %v1106, %v1895
        %1897 = vmatmul.f32.gmra.mxu0 %v1630
        %v1898 = vpop.f32.mrf.mxu0
        %v1899 = vadd.f32 %v1109, %v1898
        %1900 = vmatmul.f32.gmra.mxu0 %v1633
        %v1901 = vpop.f32.mrf.mxu0
        %v1902 = vadd.f32 %v1112, %v1901
        %1903 = vmatmul.f32.gmra.mxu0 %v1636
        %v1904 = vpop.f32.mrf.mxu0
        %v1905 = vadd.f32 %v1115, %v1904
        %1906 = vmatmul.f32.gmra.mxu0 %v1639
        %v1907 = vpop.f32.mrf.mxu0
        %v1908 = vadd.f32 %v1118, %v1907
        %1909 = vmatmul.f32.gmra.mxu0 %v1642
        %v1910 = vpop.f32.mrf.mxu0
        %v1911 = vadd.f32 %v1121, %v1910
        %1912 = vmatmul.f32.gmra.mxu0 %v1645
        %v1913 = vpop.f32.mrf.mxu0
        %v1914 = vadd.f32 %v1124, %v1913
        %1915 = vmatmul.f32.gmra.mxu0 %v1648
        %v1916 = vpop.f32.mrf.mxu0
        %v1917 = vadd.f32 %v1127, %v1916
        %1918 = vmatmul.f32.gmra.mxu0 %v1651
        %v1919 = vpop.f32.mrf.mxu0
        %v1920 = vadd.f32 %v1130, %v1919
        %1921 = vmatmul.f32.gmra.mxu0 %v1654
        %v1922 = vpop.f32.mrf.mxu0
        %v1923 = vadd.f32 %v1133, %v1922
        %1924 = vmatmul.f32.gmra.mxu0 %v1657
        %v1925 = vpop.f32.mrf.mxu0
        %v1926 = vadd.f32 %v1136, %v1925
        %1927 = vmatmul.f32.gmra.mxu0 %v1660
        %v1928 = vpop.f32.mrf.mxu0
        %v1929 = vadd.f32 %v1139, %v1928
        %1930 = vmatmul.f32.gmra.mxu0 %v1663
        %v1931 = vpop.f32.mrf.mxu0
        %v1932 = vadd.f32 %v1142, %v1931
        %1933 = vmatmul.f32.gmra.mxu0 %v1666
        %v1934 = vpop.f32.mrf.mxu0
        %v1935 = vadd.f32 %v1145, %v1934
        %1936 = vmatmul.f32.gmra.mxu0 %v1669
        %v1937 = vpop.f32.mrf.mxu0
        %v1938 = vadd.f32 %v1148, %v1937
        %1939 = vmatmul.f32.gmra.mxu0 %v1672
        %v1940 = vpop.f32.mrf.mxu0
        %v1941 = vadd.f32 %v1151, %v1940
        %1942 = vmatmul.f32.gmra.mxu0 %v1675
        %v1943 = vpop.f32.mrf.mxu0
        %v1944 = vadd.f32 %v1154, %v1943
        %1945 = vmatmul.f32.gmra.mxu0 %v1678
        %v1946 = vpop.f32.mrf.mxu0
        %v1947 = vadd.f32 %v1157, %v1946
        %1948 = vmatmul.f32.gmra.mxu0 %v1681
        %v1949 = vpop.f32.mrf.mxu0
        %v1950 = vadd.f32 %v1160, %v1949
        %1951 = vmatmul.f32.gmra.mxu0 %v1684
        %v1952 = vpop.f32.mrf.mxu0
        %v1953 = vadd.f32 %v1163, %v1952
        %1954 = vmatmul.f32.gmra.mxu0 %v1687
        %v1955 = vpop.f32.mrf.mxu0
        %v1956 = vadd.f32 %v1166, %v1955
        %1957 = vmatmul.f32.gmra.mxu0 %v1690
        %v1958 = vpop.f32.mrf.mxu0
        %v1959 = vadd.f32 %v1169, %v1958
        %1960 = vmatmul.f32.gmra.mxu0 %v1693
        %v1961 = vpop.f32.mrf.mxu0
        %v1962 = vadd.f32 %v1172, %v1961
        %1963 = vmatmul.f32.gmra.mxu0 %v1696
        %v1964 = vpop.f32.mrf.mxu0
        %v1965 = vadd.f32 %v1175, %v1964
        %1966 = vmatmul.f32.gmra.mxu0 %v1699
        %v1967 = vpop.f32.mrf.mxu0
        %v1968 = vadd.f32 %v1178, %v1967
        %1969 = vmatmul.f32.gmra.mxu0 %v1702
        %v1970 = vpop.f32.mrf.mxu0
        %v1971 = vadd.f32 %v1181, %v1970
        %1972 = vmatmul.f32.gmra.mxu0 %v1705
        %v1973 = vpop.f32.mrf.mxu0
        %v1974 = vadd.f32 %v1184, %v1973
        %1975 = vmatmul.f32.gmra.mxu0 %v1708
        %v1976 = vpop.f32.mrf.mxu0
        %v1977 = vadd.f32 %v1187, %v1976
        %1978 = vmatmul.f32.gmra.mxu0 %v1711
        %v1979 = vpop.f32.mrf.mxu0
        %v1980 = vadd.f32 %v1190, %v1979
        %1981 = vmatmul.f32.gmra.mxu0 %v1714
        %v1982 = vpop.f32.mrf.mxu0
        %v1983 = vadd.f32 %v1193, %v1982
        %1984 = vmatmul.f32.gmra.mxu0 %v1717
        %v1985 = vpop.f32.mrf.mxu0
        %v1986 = vadd.f32 %v1196, %v1985
        %1987 = vmatmul.f32.gmra.mxu0 %v1720
        %v1988 = vpop.f32.mrf.mxu0
        %v1989 = vadd.f32 %v1199, %v1988
        %1990 = vmatmul.f32.gmra.mxu0 %v1723
        %v1991 = vpop.f32.mrf.mxu0
        %v1992 = vadd.f32 %v1202, %v1991
        %1993 = vmatmul.f32.gmra.mxu0 %v1726
        %v1994 = vpop.f32.mrf.mxu0
        %v1995 = vadd.f32 %v1205, %v1994
        %1996 = vmatmul.f32.gmra.mxu0 %v1729
        %v1997 = vpop.f32.mrf.mxu0
        %v1998 = vadd.f32 %v1208, %v1997
        %1999 = vmatmul.f32.gmra.mxu0 %v1732
        %v2000 = vpop.f32.mrf.mxu0
        %v2001 = vadd.f32 %v1211, %v2000
        %2002 = vmatmul.f32.gmra.mxu0 %v1735
        %v2003 = vpop.f32.mrf.mxu0
        %v2004 = vadd.f32 %v1214, %v2003
        %2005 = vmatmul.f32.gmra.mxu0 %v1738
        %v2006 = vpop.f32.mrf.mxu0
        %v2007 = vadd.f32 %v1217, %v2006
        %2008 = vmatmul.f32.gmra.mxu0 %v1741
        %v2009 = vpop.f32.mrf.mxu0
        %v2010 = vadd.f32 %v1220, %v2009
        %2011 = vmatmul.f32.gmra.mxu0 %v1744
        %v2012 = vpop.f32.mrf.mxu0
        %v2013 = vadd.f32 %v1223, %v2012
        %2014 = vmatmul.f32.gmra.mxu0 %v1747
        %v2015 = vpop.f32.mrf.mxu0
        %v2016 = vadd.f32 %v1226, %v2015
        %2017 = vmatmul.f32.gmra.mxu0 %v1750
        %v2018 = vpop.f32.mrf.mxu0
        %v2019 = vadd.f32 %v1229, %v2018
        %2020 = vmatmul.f32.gmra.mxu0 %v1753
        %v2021 = vpop.f32.mrf.mxu0
        %v2022 = vadd.f32 %v1232, %v2021
        %2023 = vmatmul.f32.gmra.mxu0 %v1756
        %v2024 = vpop.f32.mrf.mxu0
        %v2025 = vadd.f32 %v1235, %v2024
        %2026 = vmatmul.f32.gmra.mxu0 %v1759
        %v2027 = vpop.f32.mrf.mxu0
        %v2028 = vadd.f32 %v1238, %v2027
        %2029 = vmatmul.f32.gmra.mxu0 %v1762
        %v2030 = vpop.f32.mrf.mxu0
        %v2031 = vadd.f32 %v1241, %v2030
        %2032 = vmatmul.f32.gmra.mxu0 %v1765
        %v2033 = vpop.f32.mrf.mxu0
        %v2034 = vadd.f32 %v1244, %v2033
        %2035 = vmatmul.f32.gmra.mxu0 %v1768
        %v2036 = vpop.f32.mrf.mxu0
        %v2037 = vadd.f32 %v1247, %v2036
        %2038 = vmatmul.f32.gmra.mxu0 %v1771
        %v2039 = vpop.f32.mrf.mxu0
        %v2040 = vadd.f32 %v1250, %v2039
        %2041 = vdwg.mxu0
        %2042 = vmatpush.msra.mxu0 0.0
        %2043 = vmatpush.msra.mxu0 0.0
        %2044 = vmatpush.msra.mxu0 0.0
        %2045 = vmatpush.msra.mxu0 0.0
        %2046 = vmatpush.msra.mxu0 0.0
        %2047 = vmatpush.msra.mxu0 0.0
        %2048 = vmatpush.msra.mxu0 0.0
        %2049 = vmatpush.msra.mxu0 0.0
        %2050 = vmatpush.msra.mxu0 0.0
        %2051 = vmatpush.msra.mxu0 0.0
        %2052 = vmatpush.msra.mxu0 %v468
        %2053 = vmatpush.msra.mxu0 %v465
        %2054 = vmatpush.msra.mxu0 %v462
        %2055 = vmatpush.msra.mxu0 %v459
        %2056 = vmatpush.msra.mxu0 %v456
        %2057 = vmatpush.msra.mxu0 %v453
        %2058 = vmatmul.f32.gmra.mxu0 %v1522
        %v2059 = vpop.f32.mrf.mxu0
        %v2060 = vadd.f32 %v1270, %v2059
        %2061 = vmatmul.f32.gmra.mxu0 %v1525
        %v2062 = vpop.f32.mrf.mxu0
        %v2063 = vadd.f32 %v1273, %v2062
        %2064 = vmatmul.f32.gmra.mxu0 %v1528
        %v2065 = vpop.f32.mrf.mxu0
        %v2066 = vadd.f32 %v1276, %v2065
        %2067 = vmatmul.f32.gmra.mxu0 %v1531
        %v2068 = vpop.f32.mrf.mxu0
        %v2069 = vadd.f32 %v1279, %v2068
        %2070 = vmatmul.f32.gmra.mxu0 %v1534
        %v2071 = vpop.f32.mrf.mxu0
        %v2072 = vadd.f32 %v1282, %v2071
        %2073 = vmatmul.f32.gmra.mxu0 %v1537
        %v2074 = vpop.f32.mrf.mxu0
        %v2075 = vadd.f32 %v1285, %v2074
        %2076 = vmatmul.f32.gmra.mxu0 %v1540
        %v2077 = vpop.f32.mrf.mxu0
        %v2078 = vadd.f32 %v1288, %v2077
        %2079 = vmatmul.f32.gmra.mxu0 %v1543
        %v2080 = vpop.f32.mrf.mxu0
        %v2081 = vadd.f32 %v1291, %v2080
        %2082 = vmatmul.f32.gmra.mxu0 %v1546
        %v2083 = vpop.f32.mrf.mxu0
        %v2084 = vadd.f32 %v1294, %v2083
        %2085 = vmatmul.f32.gmra.mxu0 %v1549
        %v2086 = vpop.f32.mrf.mxu0
        %v2087 = vadd.f32 %v1297, %v2086
        %2088 = vmatmul.f32.gmra.mxu0 %v1552
        %v2089 = vpop.f32.mrf.mxu0
        %v2090 = vadd.f32 %v1300, %v2089
        %2091 = vmatmul.f32.gmra.mxu0 %v1555
        %v2092 = vpop.f32.mrf.mxu0
        %v2093 = vadd.f32 %v1303, %v2092
        %2094 = vmatmul.f32.gmra.mxu0 %v1558
        %v2095 = vpop.f32.mrf.mxu0
        %v2096 = vadd.f32 %v1306, %v2095
        %2097 = vmatmul.f32.gmra.mxu0 %v1561
        %v2098 = vpop.f32.mrf.mxu0
        %v2099 = vadd.f32 %v1309, %v2098
        %2100 = vmatmul.f32.gmra.mxu0 %v1564
        %v2101 = vpop.f32.mrf.mxu0
        %v2102 = vadd.f32 %v1312, %v2101
        %2103 = vmatmul.f32.gmra.mxu0 %v1567
        %v2104 = vpop.f32.mrf.mxu0
        %v2105 = vadd.f32 %v1315, %v2104
        %2106 = vmatmul.f32.gmra.mxu0 %v1570
        %v2107 = vpop.f32.mrf.mxu0
        %v2108 = vadd.f32 %v1318, %v2107
        %2109 = vmatmul.f32.gmra.mxu0 %v1573
        %v2110 = vpop.f32.mrf.mxu0
        %v2111 = vadd.f32 %v1321, %v2110
        %2112 = vmatmul.f32.gmra.mxu0 %v1576
        %v2113 = vpop.f32.mrf.mxu0
        %v2114 = vadd.f32 %v1324, %v2113
        %2115 = vmatmul.f32.gmra.mxu0 %v1579
        %v2116 = vpop.f32.mrf.mxu0
        %v2117 = vadd.f32 %v1327, %v2116
        %2118 = vmatmul.f32.gmra.mxu0 %v1582
        %v2119 = vpop.f32.mrf.mxu0
        %v2120 = vadd.f32 %v1330, %v2119
        %2121 = vmatmul.f32.gmra.mxu0 %v1585
        %v2122 = vpop.f32.mrf.mxu0
        %v2123 = vadd.f32 %v1333, %v2122
        %2124 = vmatmul.f32.gmra.mxu0 %v1588
        %v2125 = vpop.f32.mrf.mxu0
        %v2126 = vadd.f32 %v1336, %v2125
        %2127 = vmatmul.f32.gmra.mxu0 %v1591
        %v2128 = vpop.f32.mrf.mxu0
        %v2129 = vadd.f32 %v1339, %v2128
        %2130 = vmatmul.f32.gmra.mxu0 %v1594
        %v2131 = vpop.f32.mrf.mxu0
        %v2132 = vadd.f32 %v1342, %v2131
        %2133 = vmatmul.f32.gmra.mxu0 %v1597
        %v2134 = vpop.f32.mrf.mxu0
        %v2135 = vadd.f32 %v1345, %v2134
        %2136 = vmatmul.f32.gmra.mxu0 %v1600
        %v2137 = vpop.f32.mrf.mxu0
        %v2138 = vadd.f32 %v1348, %v2137
        %2139 = vmatmul.f32.gmra.mxu0 %v1603
        %v2140 = vpop.f32.mrf.mxu0
        %v2141 = vadd.f32 %v1351, %v2140
        %2142 = vmatmul.f32.gmra.mxu0 %v1606
        %v2143 = vpop.f32.mrf.mxu0
        %v2144 = vadd.f32 %v1354, %v2143
        %2145 = vmatmul.f32.gmra.mxu0 %v1609
        %v2146 = vpop.f32.mrf.mxu0
        %v2147 = vadd.f32 %v1357, %v2146
        %2148 = vmatmul.f32.gmra.mxu0 %v1612
        %v2149 = vpop.f32.mrf.mxu0
        %v2150 = vadd.f32 %v1360, %v2149
        %2151 = vmatmul.f32.gmra.mxu0 %v1615
        %v2152 = vpop.f32.mrf.mxu0
        %v2153 = vadd.f32 %v1363, %v2152
        %2154 = vmatmul.f32.gmra.mxu0 %v1618
        %v2155 = vpop.f32.mrf.mxu0
        %v2156 = vadd.f32 %v1366, %v2155
        %2157 = vmatmul.f32.gmra.mxu0 %v1621
        %v2158 = vpop.f32.mrf.mxu0
        %v2159 = vadd.f32 %v1369, %v2158
        %2160 = vmatmul.f32.gmra.mxu0 %v1624
        %v2161 = vpop.f32.mrf.mxu0
        %v2162 = vadd.f32 %v1372, %v2161
        %2163 = vmatmul.f32.gmra.mxu0 %v1627
        %v2164 = vpop.f32.mrf.mxu0
        %v2165 = vadd.f32 %v1375, %v2164
        %2166 = vmatmul.f32.gmra.mxu0 %v1630
        %v2167 = vpop.f32.mrf.mxu0
        %v2168 = vadd.f32 %v1378, %v2167
        %2169 = vmatmul.f32.gmra.mxu0 %v1633
        %v2170 = vpop.f32.mrf.mxu0
        %v2171 = vadd.f32 %v1381, %v2170
        %2172 = vmatmul.f32.gmra.mxu0 %v1636
        %v2173 = vpop.f32.mrf.mxu0
        %v2174 = vadd.f32 %v1384, %v2173
        %2175 = vmatmul.f32.gmra.mxu0 %v1639
        %v2176 = vpop.f32.mrf.mxu0
        %v2177 = vadd.f32 %v1387, %v2176
        %2178 = vmatmul.f32.gmra.mxu0 %v1642
        %v2179 = vpop.f32.mrf.mxu0
        %v2180 = vadd.f32 %v1390, %v2179
        %2181 = vmatmul.f32.gmra.mxu0 %v1645
        %v2182 = vpop.f32.mrf.mxu0
        %v2183 = vadd.f32 %v1393, %v2182
        %2184 = vmatmul.f32.gmra.mxu0 %v1648
        %v2185 = vpop.f32.mrf.mxu0
        %v2186 = vadd.f32 %v1396, %v2185
        %2187 = vmatmul.f32.gmra.mxu0 %v1651
        %v2188 = vpop.f32.mrf.mxu0
        %v2189 = vadd.f32 %v1399, %v2188
        %2190 = vmatmul.f32.gmra.mxu0 %v1654
        %v2191 = vpop.f32.mrf.mxu0
        %v2192 = vadd.f32 %v1402, %v2191
        %2193 = vmatmul.f32.gmra.mxu0 %v1657
        %v2194 = vpop.f32.mrf.mxu0
        %v2195 = vadd.f32 %v1405, %v2194
        %2196 = vmatmul.f32.gmra.mxu0 %v1660
        %v2197 = vpop.f32.mrf.mxu0
        %v2198 = vadd.f32 %v1408, %v2197
        %2199 = vmatmul.f32.gmra.mxu0 %v1663
        %v2200 = vpop.f32.mrf.mxu0
        %v2201 = vadd.f32 %v1411, %v2200
        %2202 = vmatmul.f32.gmra.mxu0 %v1666
        %v2203 = vpop.f32.mrf.mxu0
        %v2204 = vadd.f32 %v1414, %v2203
        %2205 = vmatmul.f32.gmra.mxu0 %v1669
        %v2206 = vpop.f32.mrf.mxu0
        %v2207 = vadd.f32 %v1417, %v2206
        %2208 = vmatmul.f32.gmra.mxu0 %v1672
        %v2209 = vpop.f32.mrf.mxu0
        %v2210 = vadd.f32 %v1420, %v2209
        %2211 = vmatmul.f32.gmra.mxu0 %v1675
        %v2212 = vpop.f32.mrf.mxu0
        %v2213 = vadd.f32 %v1423, %v2212
        %2214 = vmatmul.f32.gmra.mxu0 %v1678
        %v2215 = vpop.f32.mrf.mxu0
        %v2216 = vadd.f32 %v1426, %v2215
        %2217 = vmatmul.f32.gmra.mxu0 %v1681
        %v2218 = vpop.f32.mrf.mxu0
        %v2219 = vadd.f32 %v1429, %v2218
        %2220 = vmatmul.f32.gmra.mxu0 %v1684
        %v2221 = vpop.f32.mrf.mxu0
        %v2222 = vadd.f32 %v1432, %v2221
        %2223 = vmatmul.f32.gmra.mxu0 %v1687
        %v2224 = vpop.f32.mrf.mxu0
        %v2225 = vadd.f32 %v1435, %v2224
        %2226 = vmatmul.f32.gmra.mxu0 %v1690
        %v2227 = vpop.f32.mrf.mxu0
        %v2228 = vadd.f32 %v1438, %v2227
        %2229 = vmatmul.f32.gmra.mxu0 %v1693
        %v2230 = vpop.f32.mrf.mxu0
        %v2231 = vadd.f32 %v1441, %v2230
        %2232 = vmatmul.f32.gmra.mxu0 %v1696
        %v2233 = vpop.f32.mrf.mxu0
        %v2234 = vadd.f32 %v1444, %v2233
        %2235 = vmatmul.f32.gmra.mxu0 %v1699
        %v2236 = vpop.f32.mrf.mxu0
        %v2237 = vadd.f32 %v1447, %v2236
        %2238 = vmatmul.f32.gmra.mxu0 %v1702
        %v2239 = vpop.f32.mrf.mxu0
        %v2240 = vadd.f32 %v1450, %v2239
        %2241 = vmatmul.f32.gmra.mxu0 %v1705
        %v2242 = vpop.f32.mrf.mxu0
        %v2243 = vadd.f32 %v1453, %v2242
        %2244 = vmatmul.f32.gmra.mxu0 %v1708
        %v2245 = vpop.f32.mrf.mxu0
        %v2246 = vadd.f32 %v1456, %v2245
        %2247 = vmatmul.f32.gmra.mxu0 %v1711
        %v2248 = vpop.f32.mrf.mxu0
        %v2249 = vadd.f32 %v1459, %v2248
        %2250 = vmatmul.f32.gmra.mxu0 %v1714
        %v2251 = vpop.f32.mrf.mxu0
        %v2252 = vadd.f32 %v1462, %v2251
        %2253 = vmatmul.f32.gmra.mxu0 %v1717
        %v2254 = vpop.f32.mrf.mxu0
        %v2255 = vadd.f32 %v1465, %v2254
        %2256 = vmatmul.f32.gmra.mxu0 %v1720
        %v2257 = vpop.f32.mrf.mxu0
        %v2258 = vadd.f32 %v1468, %v2257
        %2259 = vmatmul.f32.gmra.mxu0 %v1723
        %v2260 = vpop.f32.mrf.mxu0
        %v2261 = vadd.f32 %v1471, %v2260
        %2262 = vmatmul.f32.gmra.mxu0 %v1726
        %v2263 = vpop.f32.mrf.mxu0
        %v2264 = vadd.f32 %v1474, %v2263
        %2265 = vmatmul.f32.gmra.mxu0 %v1729
        %v2266 = vpop.f32.mrf.mxu0
        %v2267 = vadd.f32 %v1477, %v2266
        %2268 = vmatmul.f32.gmra.mxu0 %v1732
        %v2269 = vpop.f32.mrf.mxu0
        %v2270 = vadd.f32 %v1480, %v2269
        %2271 = vmatmul.f32.gmra.mxu0 %v1735
        %v2272 = vpop.f32.mrf.mxu0
        %v2273 = vadd.f32 %v1483, %v2272
        %2274 = vmatmul.f32.gmra.mxu0 %v1738
        %v2275 = vpop.f32.mrf.mxu0
        %v2276 = vadd.f32 %v1486, %v2275
        %2277 = vmatmul.f32.gmra.mxu0 %v1741
        %v2278 = vpop.f32.mrf.mxu0
        %v2279 = vadd.f32 %v1489, %v2278
        %2280 = vmatmul.f32.gmra.mxu0 %v1744
        %v2281 = vpop.f32.mrf.mxu0
        %v2282 = vadd.f32 %v1492, %v2281
        %2283 = vmatmul.f32.gmra.mxu0 %v1747
        %v2284 = vpop.f32.mrf.mxu0
        %v2285 = vadd.f32 %v1495, %v2284
        %2286 = vmatmul.f32.gmra.mxu0 %v1750
        %v2287 = vpop.f32.mrf.mxu0
        %v2288 = vadd.f32 %v1498, %v2287
        %2289 = vmatmul.f32.gmra.mxu0 %v1753
        %v2290 = vpop.f32.mrf.mxu0
        %v2291 = vadd.f32 %v1501, %v2290
        %2292 = vmatmul.f32.gmra.mxu0 %v1756
        %v2293 = vpop.f32.mrf.mxu0
        %v2294 = vadd.f32 %v1504, %v2293
        %2295 = vmatmul.f32.gmra.mxu0 %v1759
        %v2296 = vpop.f32.mrf.mxu0
        %v2297 = vadd.f32 %v1507, %v2296
        %2298 = vmatmul.f32.gmra.mxu0 %v1762
        %v2299 = vpop.f32.mrf.mxu0
        %v2300 = vadd.f32 %v1510, %v2299
        %2301 = vmatmul.f32.gmra.mxu0 %v1765
        %v2302 = vpop.f32.mrf.mxu0
        %v2303 = vadd.f32 %v1513, %v2302
        %2304 = vmatmul.f32.gmra.mxu0 %v1768
        %v2305 = vpop.f32.mrf.mxu0
        %v2306 = vadd.f32 %v1516, %v2305
        %2307 = vmatmul.f32.gmra.mxu0 %v1771
        %v2308 = vpop.f32.mrf.mxu0
        %v2309 = vadd.f32 %v1519, %v2308
        %2310 = vdwg.mxu0
        %2311 = vst [vmem:[%s334] sm:$0xff] %v1791
        %vm2312 = vcmask 785408
        %2313 = vst.msk [vmem:[%s334 + $0x8] sm:$0xff] %vm2312, %v2060
        %2314 = vst [vmem:[%s334 + $0x10] sm:$0xff] %v1794
        %2315 = vst.msk [vmem:[%s334 + $0x18] sm:$0xff] %vm2312, %v2063
        %2316 = vst [vmem:[%s334 + $0x20] sm:$0xff] %v1797
        %2317 = vst.msk [vmem:[%s334 + $0x28] sm:$0xff] %vm2312, %v2066
        %2318 = vst [vmem:[%s334 + $0x30] sm:$0xff] %v1800
        %2319 = vst.msk [vmem:[%s334 + $0x38] sm:$0xff] %vm2312, %v2069
        %2320 = vst [vmem:[%s334 + $0x40] sm:$0xff] %v1803
        %2321 = vst.msk [vmem:[%s334 + $0x48] sm:$0xff] %vm2312, %v2072
        %2322 = vst [vmem:[%s334 + $0x50] sm:$0xff] %v1806
        %2323 = vst.msk [vmem:[%s334 + $0x58] sm:$0xff] %vm2312, %v2075
        %2324 = vst [vmem:[%s334 + $0x60] sm:$0xff] %v1809
        %2325 = vst.msk [vmem:[%s334 + $0x68] sm:$0xff] %vm2312, %v2078
        %2326 = vst [vmem:[%s334 + $0x70] sm:$0xff] %v1812
        %2327 = vst.msk [vmem:[%s334 + $0x78] sm:$0xff] %vm2312, %v2081
        %2328 = vst [vmem:[%s334 + $0x80] sm:$0xff] %v1815
        %2329 = vst.msk [vmem:[%s334 + $0x88] sm:$0xff] %vm2312, %v2084
        %2330 = vst [vmem:[%s334 + $0x90] sm:$0xff] %v1818
        %2331 = vst.msk [vmem:[%s334 + $0x98] sm:$0xff] %vm2312, %v2087
        %2332 = vst [vmem:[%s334 + $0xa0] sm:$0xff] %v1821
        %2333 = vst.msk [vmem:[%s334 + $0xa8] sm:$0xff] %vm2312, %v2090
        %2334 = vst [vmem:[%s334 + $0xb0] sm:$0xff] %v1824
        %2335 = vst.msk [vmem:[%s334 + $0xb8] sm:$0xff] %vm2312, %v2093
        %2336 = vst [vmem:[%s334 + $0xc0] sm:$0xff] %v1827
        %2337 = vst.msk [vmem:[%s334 + $0xc8] sm:$0xff] %vm2312, %v2096
        %2338 = vst [vmem:[%s334 + $0xd0] sm:$0xff] %v1830
        %2339 = vst.msk [vmem:[%s334 + $0xd8] sm:$0xff] %vm2312, %v2099
        %2340 = vst [vmem:[%s334 + $0xe0] sm:$0xff] %v1833
        %2341 = vst.msk [vmem:[%s334 + $0xe8] sm:$0xff] %vm2312, %v2102
        %2342 = vst [vmem:[%s334 + $0xf0] sm:$0xff] %v1836
        %2343 = vst.msk [vmem:[%s334 + $0xf8] sm:$0xff] %vm2312, %v2105
        %2344 = vst [vmem:[%s334 + $0x100] sm:$0xff] %v1839
        %2345 = vst.msk [vmem:[%s334 + $0x108] sm:$0xff] %vm2312, %v2108
        %2346 = vst [vmem:[%s334 + $0x110] sm:$0xff] %v1842
        %2347 = vst.msk [vmem:[%s334 + $0x118] sm:$0xff] %vm2312, %v2111
        %2348 = vst [vmem:[%s334 + $0x120] sm:$0xff] %v1845
        %2349 = vst.msk [vmem:[%s334 + $0x128] sm:$0xff] %vm2312, %v2114
        %2350 = vst [vmem:[%s334 + $0x130] sm:$0xff] %v1848
        %2351 = vst.msk [vmem:[%s334 + $0x138] sm:$0xff] %vm2312, %v2117
        %2352 = vst [vmem:[%s334 + $0x140] sm:$0xff] %v1851
        %2353 = vst.msk [vmem:[%s334 + $0x148] sm:$0xff] %vm2312, %v2120
        %2354 = vst [vmem:[%s334 + $0x150] sm:$0xff] %v1854
        %2355 = vst.msk [vmem:[%s334 + $0x158] sm:$0xff] %vm2312, %v2123
        %2356 = vst [vmem:[%s334 + $0x160] sm:$0xff] %v1857
        %2357 = vst.msk [vmem:[%s334 + $0x168] sm:$0xff] %vm2312, %v2126
        %2358 = vst [vmem:[%s334 + $0x170] sm:$0xff] %v1860
        %2359 = vst.msk [vmem:[%s334 + $0x178] sm:$0xff] %vm2312, %v2129
        %2360 = vst [vmem:[%s334 + $0x180] sm:$0xff] %v1863
        %2361 = vst.msk [vmem:[%s334 + $0x188] sm:$0xff] %vm2312, %v2132
        %2362 = vst [vmem:[%s334 + $0x190] sm:$0xff] %v1866
        %2363 = vst.msk [vmem:[%s334 + $0x198] sm:$0xff] %vm2312, %v2135
        %2364 = vst [vmem:[%s334 + $0x1a0] sm:$0xff] %v1869
        %2365 = vst.msk [vmem:[%s334 + $0x1a8] sm:$0xff] %vm2312, %v2138
        %2366 = vst [vmem:[%s334 + $0x1b0] sm:$0xff] %v1872
        %2367 = vst.msk [vmem:[%s334 + $0x1b8] sm:$0xff] %vm2312, %v2141
        %2368 = vst [vmem:[%s334 + $0x1c0] sm:$0xff] %v1875
        %2369 = vst.msk [vmem:[%s334 + $0x1c8] sm:$0xff] %vm2312, %v2144
        %2370 = vst [vmem:[%s334 + $0x1d0] sm:$0xff] %v1878
        %2371 = vst.msk [vmem:[%s334 + $0x1d8] sm:$0xff] %vm2312, %v2147
        %2372 = vst [vmem:[%s334 + $0x1e0] sm:$0xff] %v1881
        %2373 = vst.msk [vmem:[%s334 + $0x1e8] sm:$0xff] %vm2312, %v2150
        %2374 = vst [vmem:[%s334 + $0x1f0] sm:$0xff] %v1884
        %2375 = vst.msk [vmem:[%s334 + $0x1f8] sm:$0xff] %vm2312, %v2153
        %2376 = vst [vmem:[%s334 + $0x200] sm:$0xff] %v1887
        %2377 = vst.msk [vmem:[%s334 + $0x208] sm:$0xff] %vm2312, %v2156
        %2378 = vst [vmem:[%s334 + $0x210] sm:$0xff] %v1890
        %2379 = vst.msk [vmem:[%s334 + $0x218] sm:$0xff] %vm2312, %v2159
        %2380 = vst [vmem:[%s334 + $0x220] sm:$0xff] %v1893
        %2381 = vst.msk [vmem:[%s334 + $0x228] sm:$0xff] %vm2312, %v2162
        %2382 = vst [vmem:[%s334 + $0x230] sm:$0xff] %v1896
        %2383 = vst.msk [vmem:[%s334 + $0x238] sm:$0xff] %vm2312, %v2165
        %2384 = vst [vmem:[%s334 + $0x240] sm:$0xff] %v1899
        %2385 = vst.msk [vmem:[%s334 + $0x248] sm:$0xff] %vm2312, %v2168
        %2386 = vst [vmem:[%s334 + $0x250] sm:$0xff] %v1902
        %2387 = vst.msk [vmem:[%s334 + $0x258] sm:$0xff] %vm2312, %v2171
        %2388 = vst [vmem:[%s334 + $0x260] sm:$0xff] %v1905
        %2389 = vst.msk [vmem:[%s334 + $0x268] sm:$0xff] %vm2312, %v2174
        %2390 = vst [vmem:[%s334 + $0x270] sm:$0xff] %v1908
        %2391 = vst.msk [vmem:[%s334 + $0x278] sm:$0xff] %vm2312, %v2177
        %2392 = vst [vmem:[%s334 + $0x280] sm:$0xff] %v1911
        %2393 = vst.msk [vmem:[%s334 + $0x288] sm:$0xff] %vm2312, %v2180
        %2394 = vst [vmem:[%s334 + $0x290] sm:$0xff] %v1914
        %2395 = vst.msk [vmem:[%s334 + $0x298] sm:$0xff] %vm2312, %v2183
        %2396 = vst [vmem:[%s334 + $0x2a0] sm:$0xff] %v1917
        %2397 = vst.msk [vmem:[%s334 + $0x2a8] sm:$0xff] %vm2312, %v2186
        %2398 = vst [vmem:[%s334 + $0x2b0] sm:$0xff] %v1920
        %2399 = vst.msk [vmem:[%s334 + $0x2b8] sm:$0xff] %vm2312, %v2189
        %2400 = vst [vmem:[%s334 + $0x2c0] sm:$0xff] %v1923
        %2401 = vst.msk [vmem:[%s334 + $0x2c8] sm:$0xff] %vm2312, %v2192
        %2402 = vst [vmem:[%s334 + $0x2d0] sm:$0xff] %v1926
        %2403 = vst.msk [vmem:[%s334 + $0x2d8] sm:$0xff] %vm2312, %v2195
        %2404 = vst [vmem:[%s334 + $0x2e0] sm:$0xff] %v1929
        %2405 = vst.msk [vmem:[%s334 + $0x2e8] sm:$0xff] %vm2312, %v2198
        %2406 = vst [vmem:[%s334 + $0x2f0] sm:$0xff] %v1932
        %2407 = vst.msk [vmem:[%s334 + $0x2f8] sm:$0xff] %vm2312, %v2201
        %2408 = vst [vmem:[%s334 + $0x300] sm:$0xff] %v1935
        %2409 = vst.msk [vmem:[%s334 + $0x308] sm:$0xff] %vm2312, %v2204
        %2410 = vst [vmem:[%s334 + $0x310] sm:$0xff] %v1938
        %2411 = vst.msk [vmem:[%s334 + $0x318] sm:$0xff] %vm2312, %v2207
        %2412 = vst [vmem:[%s334 + $0x320] sm:$0xff] %v1941
        %2413 = vst.msk [vmem:[%s334 + $0x328] sm:$0xff] %vm2312, %v2210
        %2414 = vst [vmem:[%s334 + $0x330] sm:$0xff] %v1944
        %2415 = vst.msk [vmem:[%s334 + $0x338] sm:$0xff] %vm2312, %v2213
        %2416 = vst [vmem:[%s334 + $0x340] sm:$0xff] %v1947
        %2417 = vst.msk [vmem:[%s334 + $0x348] sm:$0xff] %vm2312, %v2216
        %2418 = vst [vmem:[%s334 + $0x350] sm:$0xff] %v1950
        %2419 = vst.msk [vmem:[%s334 + $0x358] sm:$0xff] %vm2312, %v2219
        %2420 = vst [vmem:[%s334 + $0x360] sm:$0xff] %v1953
        %2421 = vst.msk [vmem:[%s334 + $0x368] sm:$0xff] %vm2312, %v2222
        %2422 = vst [vmem:[%s334 + $0x370] sm:$0xff] %v1956
        %2423 = vst.msk [vmem:[%s334 + $0x378] sm:$0xff] %vm2312, %v2225
        %2424 = vst [vmem:[%s334 + $0x380] sm:$0xff] %v1959
        %2425 = vst.msk [vmem:[%s334 + $0x388] sm:$0xff] %vm2312, %v2228
        %2426 = vst [vmem:[%s334 + $0x390] sm:$0xff] %v1962
        %2427 = vst.msk [vmem:[%s334 + $0x398] sm:$0xff] %vm2312, %v2231
        %2428 = vst [vmem:[%s334 + $0x3a0] sm:$0xff] %v1965
        %2429 = vst.msk [vmem:[%s334 + $0x3a8] sm:$0xff] %vm2312, %v2234
        %2430 = vst [vmem:[%s334 + $0x3b0] sm:$0xff] %v1968
        %2431 = vst.msk [vmem:[%s334 + $0x3b8] sm:$0xff] %vm2312, %v2237
        %2432 = vst [vmem:[%s334 + $0x3c0] sm:$0xff] %v1971
        %2433 = vst.msk [vmem:[%s334 + $0x3c8] sm:$0xff] %vm2312, %v2240
        %2434 = vst [vmem:[%s334 + $0x3d0] sm:$0xff] %v1974
        %2435 = vst.msk [vmem:[%s334 + $0x3d8] sm:$0xff] %vm2312, %v2243
        %2436 = vst [vmem:[%s334 + $0x3e0] sm:$0xff] %v1977
        %2437 = vst.msk [vmem:[%s334 + $0x3e8] sm:$0xff] %vm2312, %v2246
        %2438 = vst [vmem:[%s334 + $0x3f0] sm:$0xff] %v1980
        %2439 = vst.msk [vmem:[%s334 + $0x3f8] sm:$0xff] %vm2312, %v2249
        %2440 = vst [vmem:[%s334 + $0x400] sm:$0xff] %v1983
        %2441 = vst.msk [vmem:[%s334 + $0x408] sm:$0xff] %vm2312, %v2252
        %2442 = vst [vmem:[%s334 + $0x410] sm:$0xff] %v1986
        %2443 = vst.msk [vmem:[%s334 + $0x418] sm:$0xff] %vm2312, %v2255
        %2444 = vst [vmem:[%s334 + $0x420] sm:$0xff] %v1989
        %2445 = vst.msk [vmem:[%s334 + $0x428] sm:$0xff] %vm2312, %v2258
        %2446 = vst [vmem:[%s334 + $0x430] sm:$0xff] %v1992
        %2447 = vst.msk [vmem:[%s334 + $0x438] sm:$0xff] %vm2312, %v2261
        %2448 = vst [vmem:[%s334 + $0x440] sm:$0xff] %v1995
        %2449 = vst.msk [vmem:[%s334 + $0x448] sm:$0xff] %vm2312, %v2264
        %2450 = vst [vmem:[%s334 + $0x450] sm:$0xff] %v1998
        %2451 = vst.msk [vmem:[%s334 + $0x458] sm:$0xff] %vm2312, %v2267
        %2452 = vst [vmem:[%s334 + $0x460] sm:$0xff] %v2001
        %2453 = vst.msk [vmem:[%s334 + $0x468] sm:$0xff] %vm2312, %v2270
        %2454 = vst [vmem:[%s334 + $0x470] sm:$0xff] %v2004
        %2455 = vst.msk [vmem:[%s334 + $0x478] sm:$0xff] %vm2312, %v2273
        %2456 = vst [vmem:[%s334 + $0x480] sm:$0xff] %v2007
        %2457 = vst.msk [vmem:[%s334 + $0x488] sm:$0xff] %vm2312, %v2276
        %2458 = vst [vmem:[%s334 + $0x490] sm:$0xff] %v2010
        %2459 = vst.msk [vmem:[%s334 + $0x498] sm:$0xff] %vm2312, %v2279
        %2460 = vst [vmem:[%s334 + $0x4a0] sm:$0xff] %v2013
        %2461 = vst.msk [vmem:[%s334 + $0x4a8] sm:$0xff] %vm2312, %v2282
        %2462 = vst [vmem:[%s334 + $0x4b0] sm:$0xff] %v2016
        %2463 = vst.msk [vmem:[%s334 + $0x4b8] sm:$0xff] %vm2312, %v2285
        %2464 = vst [vmem:[%s334 + $0x4c0] sm:$0xff] %v2019
        %2465 = vst.msk [vmem:[%s334 + $0x4c8] sm:$0xff] %vm2312, %v2288
        %2466 = vst [vmem:[%s334 + $0x4d0] sm:$0xff] %v2022
        %2467 = vst.msk [vmem:[%s334 + $0x4d8] sm:$0xff] %vm2312, %v2291
        %2468 = vst [vmem:[%s334 + $0x4e0] sm:$0xff] %v2025
        %2469 = vst.msk [vmem:[%s334 + $0x4e8] sm:$0xff] %vm2312, %v2294
        %2470 = vst [vmem:[%s334 + $0x4f0] sm:$0xff] %v2028
        %2471 = vst.msk [vmem:[%s334 + $0x4f8] sm:$0xff] %vm2312, %v2297
        %2472 = vst [vmem:[%s334 + $0x500] sm:$0xff] %v2031
        %2473 = vst.msk [vmem:[%s334 + $0x508] sm:$0xff] %vm2312, %v2300
        %2474 = vst [vmem:[%s334 + $0x510] sm:$0xff] %v2034
        %2475 = vst.msk [vmem:[%s334 + $0x518] sm:$0xff] %vm2312, %v2303
        %2476 = vst [vmem:[%s334 + $0x520] sm:$0xff] %v2037
        %2477 = vst.msk [vmem:[%s334 + $0x528] sm:$0xff] %vm2312, %v2306
        %2478 = vst [vmem:[%s334 + $0x530] sm:$0xff] %v2040
        %2479 = vst.msk [vmem:[%s334 + $0x538] sm:$0xff] %vm2312, %v2309
        %s2480 = sand.u32 %s199, 1
        %s2481 = scalar_lea.sflag [#allocation6], %s2480
        %s2482 = sand.u32 %s199, 1
        %s2483 = smul.addr %s2482, 1344
        %s2484 = scalar_lea.vmem [#allocation9], %s2483
        // Predicated region
        $region57: #{tpu_custom_call.1} parent=47 // pred_check
          %p2485 = pneg %p209
        $region58: #{tpu_custom_call.1} parent=47 // pred_check_branch
          %2487 = sbr.rel (%p2485) target = $region60
        $region59: #{tpu_custom_call.1} parent=47 // pred_region
          %2489 = vsyncadd %s2481, 0
          %s2490 = smul.addr %s32, 168
          %s2491 = smul.addr %s2490, 8
          %s2492 = scalar_lea.hbm %s8, %s2491
          %s2493 = sshll.u32 %s2484, 4
          %s2494 = int_to_ptr.vmem [resolvable:$true] %s2493
          %s2495 = sshll.u32 %s2492, 4
          %s2496 = int_to_ptr.hbm [resolvable:$true] %s2495
          %2501 = dma.vmem_to_hbm [thread:$0]  %s2494, 21504, %s2496, %s2481, 256, 256, 16
        $region60: #{tpu_custom_call.1} parent=47 // pred_fallthru
          _
      $region48: #{tpu_custom_call.1} parent=5 // pred_fallthru
        _
      %p2502 = scmp.le.s32.totalorder 2, %s27
      // Predicated region
      $region61: #{tpu_custom_call.1} parent=5 // pred_check
        %p2503 = pneg %p2502
      $region62: #{tpu_custom_call.1} parent=5 // pred_check_branch
        %2505 = sbr.rel (%p2503) target = $region64
      $region63: #{tpu_custom_call.1} parent=5 // pred_region
        %s2506 = ssub.s32 %s27, 2
        // Predicated region
        $region65: #{tpu_custom_call.1} parent=63 // pred_check
          %p2507 = pneg %p215
        $region66: #{tpu_custom_call.1} parent=63 // pred_check_branch
          %2509 = sbr.rel (%p2507) target = $region68
        $region67: #{tpu_custom_call.1} parent=63 // pred_region
          %s2510 = sand.u32 %s200, 1
          %s2511 = scalar_lea.sflag [#allocation6], %s2510
          %s2512 = sand.u32 %s200, 1
          %s2513 = smul.addr %s2512, 1344
          %s2514 = scalar_lea.vmem [#allocation9], %s2513
          %2516 = dma.done %s2511, 21504
        $region68: #{tpu_custom_call.1} parent=63 // pred_fallthru
          _
      $region64: #{tpu_custom_call.1} parent=5 // pred_fallthru
        _
    $region6: #{tpu_custom_call.1} parent=1 // loop_footer
      %s31 = sadd.s32 1, %s27
    $region7: #{tpu_custom_call.1} parent=1 // loop_footer_branch
      %26 = sbr.rel target = $region3
    $region8: #{tpu_custom_call.1} parent=1 // loop_exit
      _
    %2517 = vsyncpa [#allocation5], 1
    %s2518 = scalar_lea.sflag [#allocation5], 1
    %2519 = vsyncpa %s2518, 1
    %2520 = vsyncpa [#allocation8], 1
    %2521 = vsyncpa [#allocation6], 1
    %s2522 = scalar_lea.sflag [#allocation6], 1
    %2523 = vsyncpa %s2522, 1

</llo_original>
